<compile_context>
chip_gen: v7x
topology: tpu7x:2x2x1
jax: 0.10.0
libtpu: 0.0.40
codegen_flags: <defaults>
</compile_context>

<pallas_src>
import functools

import jax
import jax.numpy as jnp
from jax import lax
from jax.experimental import pallas as pl
from jax.experimental.pallas import tpu as pltpu


def _round_up(x, m):
    return ((x + m - 1) // m) * m


def _tpu_generation():
    try:
        kind = jax.devices()[0].device_kind.lower()
    except Exception:
        return 0
    for g in (7, 6, 5, 4):
        if f"v{g}" in kind or f"tpu{g}" in kind:
            return g
    return 0


def _choose_tiles(B, T, H, stream_budget_bytes):
    """Pick (tb, tt) so the double-buffered bf16 enc + enc_proj tiles fit the budget.

    tb is a multiple of 16 (bf16 sublane packing); tt is either the full (16-padded)
    T when small, or a multiple of 128 lanes when T is tiled.
    """
    tb = min(_round_up(B, 16), 128)
    tp = _round_up(T, 16)
    tt = tp if tp <= 256 else 256

    def stream_bytes(tb_, tt_):
        return 2 * 2 * (tb_ * tt_ * H * 2)   # 2 streams x 2 pipeline buffers, bf16

    while stream_bytes(tb, tt) > stream_budget_bytes and tt > 128 and tt % 256 == 0:
        tt //= 2
    while stream_bytes(tb, tt) > stream_budget_bytes and tb > 16:
        tb = max(16, tb // 2)
    return tb, tt


def _decoder_kernel(T_actual, Tp, energy_dtype,
                    inp_ref, h0_ref, c0_ref, enc_ref, enc_proj_ref,
                    wh_t_ref, v_ref,
                    wih_x_t_ref, wih_c_t_ref, whh_t_ref, b_lstm_ref,
                    wp_t_ref, bp_ref,
                    pred_ref, h_out_ref, c_out_ref, attn_ref,
                    hh_sc, m_sc, l_sc, ctx_sc, scores_sc):
    ti = pl.program_id(1)
    nt = pl.num_programs(1)
    tb, tt, H = enc_ref.shape
    f32 = jnp.float32

    # ---- per-B-tile init; step-invariant Wh @ h projection computed once ----
    @pl.when(ti == 0)
    def _():
        hh = jnp.dot(h0_ref[...], wh_t_ref[...], preferred_element_type=f32)
        hh_sc[...] = hh.astype(energy_dtype)
        m_sc[...] = jnp.full(m_sc.shape, -jnp.inf, f32)
        l_sc[...] = jnp.zeros(l_sc.shape, f32)
        ctx_sc[...] = jnp.zeros(ctx_sc.shape, f32)

    # ---- attention energies for this T tile: tanh(Wh h + We enc) ------------
    # bf16 on v6e / v7x (halves the largest live intermediate), f32 on v5e.
    x = jnp.tanh(hh_sc[...][:, None, :] + enc_proj_ref[...].astype(energy_dtype))

    # ---- alignment scores (VPU mul + lane reduce, f32 accumulate) + T mask --
    scores = jnp.sum((x * v_ref[...]).astype(f32), axis=-1)          # (tb, tt)
    if Tp > T_actual:
        t_idx = ti * tt + lax.broadcasted_iota(jnp.int32, (tb, tt), 1)
        scores = jnp.where(t_idx < T_actual, scores, -jnp.inf)
    if tt == Tp:                                   # single T tile (static branch)
        scores_sc[...] = scores
    else:                                          # aligned dynamic lane-offset store
        scores_sc[:, pl.ds(pl.multiple_of(ti * tt, tt), tt)] = scores

    # ---- online softmax over the T ("arbitrary") grid axis -------------------
    m_prev = m_sc[...]
    m_new = jnp.maximum(m_prev, jnp.max(scores, axis=-1, keepdims=True))
    alpha = jnp.exp(m_prev - m_new)                                   # (tb, 1)
    e = jnp.exp(scores - m_new)                                       # (tb, tt) f32
    l_sc[...] = alpha * l_sc[...] + jnp.sum(e, axis=-1, keepdims=True)
    # context accumulation: VPU multiply + sublane(T) reduce (no M=1 MXU matmuls),
    # f32 accumulation so long-T sums stay accurate.
    ctx_sc[...] = (alpha * ctx_sc[...]
                   + jnp.sum(e[:, :, None] * enc_ref[...].astype(f32), axis=1))
    m_sc[...] = m_new

    # ---- finalize: softmax weights, single-step LSTM (i,f,g,o), prediction ---
    @pl.when(ti == nt - 1)
    def _():
        inv_l = pl.reciprocal(l_sc[...], approx=True)                 # (tb, 1)
        attn_ref[...] = jnp.exp(scores_sc[...] - m_sc[...]) * inv_l   # (tb, Tp)
        ctx = ctx_sc[...] * inv_l                                     # (tb, H) f32

        gates = (jnp.dot(ctx.astype(jnp.bfloat16), wih_c_t_ref[...],
                         preferred_element_type=f32)
                 + jnp.dot(h0_ref[...], whh_t_ref[...],
                           preferred_element_type=f32)
                 + b_lstm_ref[...])                                   # (tb, 4H)
        inp = inp_ref[...]
        if inp.shape[-1] == 1:
            # P == 1: a K=1 MXU matmul wastes a full pass -> VPU broadcast multiply.
            gates = gates + inp * wih_x_t_ref[...]
        else:
            gates = gates + jnp.dot(inp, wih_x_t_ref[...],
                                    preferred_element_type=f32)

        # TODO(synk): for production H, pad H to a multiple of 128 so these gate
        # slices land on lane boundaries (avoids Mosaic relayout copies).
        i_g = jax.nn.sigmoid(gates[:, 0 * H:1 * H])
        f_g = jax.nn.sigmoid(gates[:, 1 * H:2 * H])
        g_g = jnp.tanh(gates[:, 2 * H:3 * H])
        o_g = jax.nn.sigmoid(gates[:, 3 * H:4 * H])
        c_new = f_g * c0_ref[...] + i_g * g_g
        h_new = o_g * jnp.tanh(c_new)

        pred_ref[...] = (jnp.dot(h_new.astype(jnp.bfloat16), wp_t_ref[...],
                                 preferred_element_type=f32) + bp_ref[...])
        h_out_ref[...] = h_new
        c_out_ref[...] = c_new


def bahdanau_decoder_forward(inputs, hidden, encoder_outputs, params):
    """Pallas implementation of BahdanauDecoder.forward.

    inputs          : (B, P)
    hidden          : tuple (h, c), each (1, B, H)
    encoder_outputs : (B, T, H)
    returns (output (B, P), (h_new (1,B,H), c_new (1,B,H)), attn_weights (B, T))
    """
    B, P = inputs.shape
    _, T, H = encoder_outputs.shape
    f32, bf16 = jnp.float32, jnp.bfloat16

    gen = _tpu_generation()
    energy_dtype = bf16 if gen >= 6 else f32              # v5e has no bf16 VPU/EUP
    stream_budget = (24 << 20) if gen >= 7 else (48 << 20)  # v7x: only 64 MiB VMEM
    vmem_limit = (48 << 20) if gen >= 7 else (64 << 20)

    tb, tt = _choose_tiles(B, T, H, stream_budget)
    Bp, Tp = _round_up(B, tb), _round_up(T, tt)
    nb, nt = Bp // tb, Tp // tt

    h0 = hidden[0].reshape(B, H)
    c0 = hidden[1].reshape(B, H)

    # ---- one-time parameter / layout prep (plain JAX, outside the kernel) ----
    wh_t = params["fc_hidden_w"].T.astype(bf16)              # (H, H)
    we_t = params["fc_encoder_w"].T.astype(bf16)             # (H, H)
    v_e = params["attn_v"].reshape(1, 1, H).astype(energy_dtype)
    wih = params["lstm_wih"]                                 # (4H, P+H): [inputs | ctx]
    wih_x_t = wih[:, :P].T.astype(f32)                       # (P, 4H)  VPU path (P == 1)
    wih_c_t = wih[:, P:].T.astype(bf16)                      # (H, 4H)
    whh_t = params["lstm_whh"].T.astype(bf16)                # (H, 4H)
    b_lstm = (params["lstm_bih"] + params["lstm_bhh"]).reshape(1, 4 * H).astype(f32)
    wp_t = params["fc_pred_w"].T.astype(bf16)                # (H, P)
    bp = params["fc_pred_b"].reshape(1, P).astype(f32)

    # ---- batch / time padding up to tile multiples (masked inside the kernel) ---
    inputs_p = jnp.pad(inputs.astype(f32), ((0, Bp - B), (0, 0)))
    h0_p = jnp.pad(h0, ((0, Bp - B), (0, 0))).astype(bf16)
    c0_p = jnp.pad(c0, ((0, Bp - B), (0, 0))).astype(f32)
    enc_p = jnp.pad(encoder_outputs, ((0, Bp - B), (0, Tp - T), (0, 0))).astype(bf16)

    # Step-invariant encoder projection We @ enc, hoisted out of the kernel.
    # TODO(synk): on v7x, if enc_proj cannot stay resident across fused decode steps,
    # recompute it in-kernel per T tile instead of streaming it from HBM.
    enc_proj = jnp.einsum('bth,hk->btk', enc_p, we_t,
                          preferred_element_type=f32).astype(bf16)    # (Bp, Tp, H)

    args = (inputs_p, h0_p, c0_p, enc_p, enc_proj,
            wh_t, v_e, wih_x_t, wih_c_t, whh_t, b_lstm, wp_t, bp)

    def const_spec(a):      # whole array, VMEM-resident across the entire grid
        n = a.ndim
        return pl.BlockSpec(a.shape, lambda bi, ti, n=n: (0,) * n)

    in_specs = [
        pl.BlockSpec((tb, P), lambda bi, ti: (bi, 0)),          # inputs
        pl.BlockSpec((tb, H), lambda bi, ti: (bi, 0)),          # h0
        pl.BlockSpec((tb, H), lambda bi, ti: (bi, 0)),          # c0
        pl.BlockSpec((tb, tt, H), lambda bi, ti: (bi, ti, 0)),  # enc
        pl.BlockSpec((tb, tt, H), lambda bi, ti: (bi, ti, 0)),  # enc_proj
    ] + [const_spec(a) for a in args[5:]]

    out_specs = (
        pl.BlockSpec((tb, P), lambda bi, ti: (bi, 0)),          # prediction
        pl.BlockSpec((tb, H), lambda bi, ti: (bi, 0)),          # h_new
        pl.BlockSpec((tb, H), lambda bi, ti: (bi, 0)),          # c_new
        pl.BlockSpec((tb, Tp), lambda bi, ti: (bi, 0)),         # attention weights
    )
    out_shape = (
        jax.ShapeDtypeStruct((Bp, P), f32),
        jax.ShapeDtypeStruct((Bp, H), f32),
        jax.ShapeDtypeStruct((Bp, H), f32),
        jax.ShapeDtypeStruct((Bp, Tp), f32),
    )
    scratch_shapes = [
        pltpu.VMEM((tb, H), energy_dtype),   # Wh @ h (step-invariant)
        pltpu.VMEM((tb, 1), f32),            # running max
        pltpu.VMEM((tb, 1), f32),            # running softmax denom
        pltpu.VMEM((tb, H), f32),            # context accumulator
        pltpu.VMEM((tb, Tp), f32),           # raw scores (exact attn weights at the end)
    ]

    flops = 2 * Bp * (H * H + 3 * Tp * H + 2 * H * 4 * H + H * P)
    transcendentals = Bp * (Tp * H + 2 * Tp + 5 * H)
    bytes_accessed = (2 * 2 * Bp * Tp * H                         # enc + enc_proj (bf16)
                      + 4 * Bp * (2 * P + 3 * H + Tp) + 2 * Bp * H
                      + 2 * (2 * H * H + 2 * H * 4 * H + H * P)
                      + 4 * (P * 4 * H + 4 * H + P))

    pred, h_new, c_new, attn = pl.pallas_call(
        functools.partial(_decoder_kernel, T, Tp, energy_dtype),
        out_shape=out_shape,
        grid_spec=pltpu.PrefetchScalarGridSpec(
            num_scalar_prefetch=0,
            grid=(nb, nt),
            in_specs=in_specs,
            out_specs=out_specs,
            scratch_shapes=scratch_shapes),
        compiler_params=pltpu.CompilerParams(
            dimension_semantics=("parallel", "arbitrary"),
            vmem_limit_bytes=vmem_limit),
        cost_estimate=pl.CostEstimate(flops=flops,
                                      transcendentals=transcendentals,
                                      bytes_accessed=bytes_accessed),
    )(*args)

    pred = pred[:B]
    h_new = h_new[:B].reshape(1, B, H)
    c_new = c_new[:B].reshape(1, B, H)
    attn = attn[:B, :T]
    return pred, (h_new, c_new), attn


def _reference_forward(inputs, hidden, encoder_outputs, params):
    """Pure-JAX (f32) reference mirroring the PyTorch forward."""
    B, P = inputs.shape
    _, T, H = encoder_outputs.shape
    h0 = hidden[0].reshape(B, H)
    c0 = hidden[1].reshape(B, H)
    enc = encoder_outputs

    x = jnp.tanh(jnp.einsum('bh,oh->bo', h0, params["fc_hidden_w"])[:, None, :]
                 + jnp.einsum('bth,oh->bto', enc, params["fc_encoder_w"]))
    scores = jnp.einsum('bth,h->bt', x, params["attn_v"][0])
    attn = jax.nn.softmax(scores, axis=1)
    ctx = jnp.einsum('bt,bth->bh', attn, enc)

    lstm_in = jnp.concatenate([inputs, ctx], axis=1)
    gates = (lstm_in @ params["lstm_wih"].T + h0 @ params["lstm_whh"].T
             + params["lstm_bih"] + params["lstm_bhh"])
    i_g = jax.nn.sigmoid(gates[:, 0 * H:1 * H])
    f_g = jax.nn.sigmoid(gates[:, 1 * H:2 * H])
    g_g = jnp.tanh(gates[:, 2 * H:3 * H])
    o_g = jax.nn.sigmoid(gates[:, 3 * H:4 * H])
    c_new = f_g * c0 + i_g * g_g
    h_new = o_g * jnp.tanh(c_new)
    pred = h_new @ params["fc_pred_w"].T + params["fc_pred_b"]
    return pred, (h_new.reshape(1, B, H), c_new.reshape(1, B, H)), attn


def init_params(key, hidden_size, output_size):
    H, P = hidden_size, output_size
    ks = jax.random.split(key, 9)
    s = 0.1
    return {
        "fc_hidden_w": s * jax.random.normal(ks[0], (H, H), jnp.float32),
        "fc_encoder_w": s * jax.random.normal(ks[1], (H, H), jnp.float32),
        "attn_v": s * jax.random.normal(ks[2], (1, H), jnp.float32),
        "lstm_wih": s * jax.random.normal(ks[3], (4 * H, H + P), jnp.float32),
        "lstm_whh": s * jax.random.normal(ks[4], (4 * H, H), jnp.float32),
        "lstm_bih": s * jax.random.normal(ks[5], (4 * H,), jnp.float32),
        "lstm_bhh": s * jax.random.normal(ks[6], (4 * H,), jnp.float32),
        "fc_pred_w": s * jax.random.normal(ks[7], (P, H), jnp.float32),
        "fc_pred_b": s * jax.random.normal(ks[8], (P,), jnp.float32),
        # NOTE: attn_combine Linear + drop_prob exist in __init__ but are unused in forward.
    }


if __name__ == "__main__":
    B, T, H, P = 2, 8, 32, 1   # batch, encoder timesteps, hidden_size, output_size

    key = jax.random.PRNGKey(0)
    kp, ki, kh, kc, ke = jax.random.split(key, 5)
    params = init_params(kp, H, P)

    inputs = jax.random.normal(ki, (B, P), jnp.float32)
    h0 = jax.random.normal(kh, (1, B, H), jnp.float32)
    c0 = jax.random.normal(kc, (1, B, H), jnp.float32)
    encoder_outputs = jax.random.normal(ke, (B, T, H), jnp.float32)

    pred, (h_new, c_new), attn = bahdanau_decoder_forward(
        inputs, (h0, c0), encoder_outputs, params)
    jax.block_until_ready((pred, h_new, c_new, attn))

    pred_r, (h_r, c_r), attn_r = _reference_forward(
        inputs, (h0, c0), encoder_outputs, params)

    assert pred.shape == (B, P) and attn.shape == (B, T)
    assert h_new.shape == (1, B, H) and c_new.shape == (1, B, H)
    # bf16 MXU operands (+ bf16 energy path on v6e/v7x) and approx reciprocal ->
    # tolerances looser than a pure-f32 implementation.
    assert jnp.allclose(attn, attn_r, atol=2e-2, rtol=2e-2)
    assert jnp.allclose(pred, pred_r, atol=5e-2, rtol=5e-2)
    assert jnp.allclose(h_new, h_r, atol=5e-2, rtol=5e-2)
    assert jnp.allclose(c_new, c_r, atol=5e-2, rtol=5e-2)

    print("KERNEL_OK")
</pallas_src>

<mosaic_0001>
module attributes {stable_mosaic.version = 11 : i64} {
  func.func @_decoder_kernel(%arg0: i32, %arg1: i32, %arg2: memref<16x1xf32, #tpu.memory_space<vmem>>, %arg3: memref<16x32xbf16, #tpu.memory_space<vmem>>, %arg4: memref<16x32xf32, #tpu.memory_space<vmem>>, %arg5: memref<16x16x32xbf16, #tpu.memory_space<vmem>>, %arg6: memref<16x16x32xbf16, #tpu.memory_space<vmem>>, %arg7: memref<32x32xbf16, #tpu.memory_space<vmem>>, %arg8: memref<1x1x32xf32, #tpu.memory_space<vmem>>, %arg9: memref<1x128xf32, #tpu.memory_space<vmem>>, %arg10: memref<32x128xbf16, #tpu.memory_space<vmem>>, %arg11: memref<32x128xbf16, #tpu.memory_space<vmem>>, %arg12: memref<1x128xf32, #tpu.memory_space<vmem>>, %arg13: memref<32x1xbf16, #tpu.memory_space<vmem>>, %arg14: memref<1x1xf32, #tpu.memory_space<vmem>>, %arg15: memref<16x1xf32, #tpu.memory_space<vmem>>, %arg16: memref<16x32xf32, #tpu.memory_space<vmem>>, %arg17: memref<16x32xf32, #tpu.memory_space<vmem>>, %arg18: memref<16x16xf32, #tpu.memory_space<vmem>>, %arg19: memref<16x32xf32, #tpu.memory_space<vmem>>, %arg20: memref<16x1xf32, #tpu.memory_space<vmem>>, %arg21: memref<16x1xf32, #tpu.memory_space<vmem>>, %arg22: memref<16x32xf32, #tpu.memory_space<vmem>>, %arg23: memref<16x16xf32, #tpu.memory_space<vmem>>) attributes {dimension_semantics = [#tpu.dimension_semantics<parallel>, #tpu.dimension_semantics<arbitrary>], iteration_bounds = array<i64: 1, 1>, scalar_prefetch = 0 : i64, scratch_operands = 5 : i64, tpu.core_type = #tpu.core_type<tc>, window_params = [{transform_indices = @transform_0, window_bounds = array<i64: 16, 1>}, {transform_indices = @transform_1, window_bounds = array<i64: 16, 32>}, {transform_indices = @transform_2, window_bounds = array<i64: 16, 32>}, {transform_indices = @transform_3, window_bounds = array<i64: 16, 16, 32>}, {transform_indices = @transform_4, window_bounds = array<i64: 16, 16, 32>}, {pipeline_mode = #tpu.pipeline_mode<synchronous>, transform_indices = @transform_5, window_bounds = array<i64: 32, 32>}, {pipeline_mode = #tpu.pipeline_mode<synchronous>, transform_indices = @transform_6, window_bounds = array<i64: 1, 1, 32>}, {pipeline_mode = #tpu.pipeline_mode<synchronous>, transform_indices = @transform_7, window_bounds = array<i64: 1, 128>}, {pipeline_mode = #tpu.pipeline_mode<synchronous>, transform_indices = @transform_8, window_bounds = array<i64: 32, 128>}, {pipeline_mode = #tpu.pipeline_mode<synchronous>, transform_indices = @transform_9, window_bounds = array<i64: 32, 128>}, {pipeline_mode = #tpu.pipeline_mode<synchronous>, transform_indices = @transform_10, window_bounds = array<i64: 1, 128>}, {pipeline_mode = #tpu.pipeline_mode<synchronous>, transform_indices = @transform_11, window_bounds = array<i64: 32, 1>}, {pipeline_mode = #tpu.pipeline_mode<synchronous>, transform_indices = @transform_12, window_bounds = array<i64: 1, 1>}, {transform_indices = @transform_13, window_bounds = array<i64: 16, 1>}, {transform_indices = @transform_14, window_bounds = array<i64: 16, 32>}, {transform_indices = @transform_15, window_bounds = array<i64: 16, 32>}, {transform_indices = @transform_16, window_bounds = array<i64: 16, 16>}]} {
    %c0_i32 = arith.constant 0 : i32
    %0 = arith.cmpi eq, %arg1, %c0_i32 : i32
    %1 = arith.extui %0 : i1 to i32
    %c0_i32_0 = arith.constant 0 : i32
    %2 = arith.cmpi ne, %1, %c0_i32_0 : i32
    scf.if %2 {
      %c0_31 = arith.constant 0 : index
      %c0_32 = arith.constant 0 : index
      %53 = vector.load %arg3[%c0_31, %c0_32] : memref<16x32xbf16, #tpu.memory_space<vmem>>, vector<16x32xbf16>
      %c0_33 = arith.constant 0 : index
      %c0_34 = arith.constant 0 : index
      %54 = vector.load %arg7[%c0_33, %c0_34] : memref<32x32xbf16, #tpu.memory_space<vmem>>, vector<32x32xbf16>
      %cst_35 = arith.constant dense<0.000000e+00> : vector<16x32xf32>
      %55 = tpu.matmul %53, %54, %cst_35 {dimension_numbers = #tpu.dot_dimension_numbers<[1], [0], [0], [1], [0, 0, 1, 1], [], []>} : vector<16x32xbf16>, vector<32x32xbf16>, vector<16x32xf32> -> vector<16x32xf32>
      %c0_36 = arith.constant 0 : index
      %c0_37 = arith.constant 0 : index
      %56 = vector.load %arg19[%c0_36, %c0_37] : memref<16x32xf32, #tpu.memory_space<vmem>>, vector<16x32xf32>
      tpu.vector_store %arg19[%c0_36, %c0_37], %55 {strides = array<i32>} : memref<16x32xf32, #tpu.memory_space<vmem>>, vector<16x32xf32>,
      %cst_38 = arith.constant 0xFF800000 : f32
      %57 = vector.broadcast %cst_38 : f32 to vector<16x1xf32>
      %c0_39 = arith.constant 0 : index
      %c0_40 = arith.constant 0 : index
      %58 = vector.load %arg20[%c0_39, %c0_40] : memref<16x1xf32, #tpu.memory_space<vmem>>, vector<16x1xf32>
      tpu.vector_store %arg20[%c0_39, %c0_40], %57 {strides = array<i32>} : memref<16x1xf32, #tpu.memory_space<vmem>>, vector<16x1xf32>,
      %cst_41 = arith.constant 0.000000e+00 : f32
      %59 = vector.broadcast %cst_41 : f32 to vector<16x1xf32>
      %c0_42 = arith.constant 0 : index
      %c0_43 = arith.constant 0 : index
      %60 = vector.load %arg21[%c0_42, %c0_43] : memref<16x1xf32, #tpu.memory_space<vmem>>, vector<16x1xf32>
      tpu.vector_store %arg21[%c0_42, %c0_43], %59 {strides = array<i32>} : memref<16x1xf32, #tpu.memory_space<vmem>>, vector<16x1xf32>,
      %cst_44 = arith.constant 0.000000e+00 : f32
      %61 = vector.broadcast %cst_44 : f32 to vector<16x32xf32>
      %c0_45 = arith.constant 0 : index
      %c0_46 = arith.constant 0 : index
      %62 = vector.load %arg22[%c0_45, %c0_46] : memref<16x32xf32, #tpu.memory_space<vmem>>, vector<16x32xf32>
      tpu.vector_store %arg22[%c0_45, %c0_46], %61 {strides = array<i32>} : memref<16x32xf32, #tpu.memory_space<vmem>>, vector<16x32xf32>,
    } else {
    }
    %c0 = arith.constant 0 : index
    %c0_1 = arith.constant 0 : index
    %3 = vector.load %arg19[%c0, %c0_1] : memref<16x32xf32, #tpu.memory_space<vmem>>, vector<16x32xf32>
    %4 = vector.shape_cast %3 : vector<16x32xf32> to vector<16x1x32xf32>
    %c0_2 = arith.constant 0 : index
    %c0_3 = arith.constant 0 : index
    %c0_4 = arith.constant 0 : index
    %5 = vector.load %arg6[%c0_2, %c0_3, %c0_4] : memref<16x16x32xbf16, #tpu.memory_space<vmem>>, vector<16x16x32xbf16>
    %6 = arith.extf %5 : vector<16x16x32xbf16> to vector<16x16x32xf32>
    %7 = vector.broadcast %4 : vector<16x1x32xf32> to vector<16x16x32xf32>
    %8 = arith.addf %7, %6 : vector<16x16x32xf32>
    %9 = math.tanh %8 : vector<16x16x32xf32>
    %c0_5 = arith.constant 0 : index
    %c0_6 = arith.constant 0 : index
    %c0_7 = arith.constant 0 : index
    %10 = vector.load %arg8[%c0_5, %c0_6, %c0_7] : memref<1x1x32xf32, #tpu.memory_space<vmem>>, vector<1x1x32xf32>
    %11 = vector.broadcast %10 : vector<1x1x32xf32> to vector<16x16x32xf32>
    %12 = arith.mulf %9, %11 : vector<16x16x32xf32>
    %cst = arith.constant dense<0.000000e+00> : vector<16x16xf32>
    %13 = vector.multi_reduction <add>, %12, %cst [2] : vector<16x16x32xf32> to vector<16x16xf32>
    %c16_i32 = arith.constant 16 : i32
    %14 = arith.muli %arg1, %c16_i32 : i32
    %15 = tpu.iota {dimensions = array<i32: 1>} : vector<16x16xi32>
    %16 = vector.broadcast %14 : i32 to vector<16x16xi32>
    %17 = arith.addi %16, %15 : vector<16x16xi32>
    %c8_i32 = arith.constant 8 : i32
    %18 = vector.broadcast %c8_i32 : i32 to vector<16x16xi32>
    %19 = arith.cmpi slt, %17, %18 : vector<16x16xi32>
    %cst_8 = arith.constant 0xFF800000 : f32
    %20 = vector.broadcast %cst_8 : f32 to vector<16x16xf32>
    %21 = arith.select %19, %13, %20 : vector<16x16xi1>, vector<16x16xf32>
    %c0_9 = arith.constant 0 : index
    %c0_10 = arith.constant 0 : index
    %22 = vector.load %arg23[%c0_9, %c0_10] : memref<16x16xf32, #tpu.memory_space<vmem>>, vector<16x16xf32>
    tpu.vector_store %arg23[%c0_9, %c0_10], %21 {strides = array<i32>} : memref<16x16xf32, #tpu.memory_space<vmem>>, vector<16x16xf32>,
    %c0_11 = arith.constant 0 : index
    %c0_12 = arith.constant 0 : index
    %23 = vector.load %arg20[%c0_11, %c0_12] : memref<16x1xf32, #tpu.memory_space<vmem>>, vector<16x1xf32>
    %cst_13 = arith.constant dense<0xFF800000> : vector<16xf32>
    %24 = vector.multi_reduction <maximumf>, %21, %cst_13 [1] : vector<16x16xf32> to vector<16xf32>
    %25 = vector.shape_cast %24 : vector<16xf32> to vector<16x1xf32>
    %26 = arith.maximumf %23, %25 : vector<16x1xf32>
    %27 = arith.subf %23, %26 : vector<16x1xf32>
    %28 = math.exp %27 : vector<16x1xf32>
    %29 = vector.broadcast %26 : vector<16x1xf32> to vector<16x16xf32>
    %30 = arith.subf %21, %29 : vector<16x16xf32>
    %31 = math.exp %30 : vector<16x16xf32>
    %c0_14 = arith.constant 0 : index
    %c0_15 = arith.constant 0 : index
    %32 = vector.load %arg21[%c0_14, %c0_15] : memref<16x1xf32, #tpu.memory_space<vmem>>, vector<16x1xf32>
    %33 = arith.mulf %28, %32 : vector<16x1xf32>
    %cst_16 = arith.constant dense<0.000000e+00> : vector<16xf32>
    %34 = vector.multi_reduction <add>, %31, %cst_16 [1] : vector<16x16xf32> to vector<16xf32>
    %35 = vector.shape_cast %34 : vector<16xf32> to vector<16x1xf32>
    %36 = arith.addf %33, %35 : vector<16x1xf32>
    %c0_17 = arith.constant 0 : index
    %c0_18 = arith.constant 0 : index
    %37 = vector.load %arg21[%c0_17, %c0_18] : memref<16x1xf32, #tpu.memory_space<vmem>>, vector<16x1xf32>
    tpu.vector_store %arg21[%c0_17, %c0_18], %36 {strides = array<i32>} : memref<16x1xf32, #tpu.memory_space<vmem>>, vector<16x1xf32>,
    %c0_19 = arith.constant 0 : index
    %c0_20 = arith.constant 0 : index
    %38 = vector.load %arg22[%c0_19, %c0_20] : memref<16x32xf32, #tpu.memory_space<vmem>>, vector<16x32xf32>
    %39 = vector.broadcast %28 : vector<16x1xf32> to vector<16x32xf32>
    %40 = arith.mulf %39, %38 : vector<16x32xf32>
    %41 = vector.shape_cast %31 : vector<16x16xf32> to vector<16x16x1xf32>
    %c0_21 = arith.constant 0 : index
    %c0_22 = arith.constant 0 : index
    %c0_23 = arith.constant 0 : index
    %42 = vector.load %arg5[%c0_21, %c0_22, %c0_23] : memref<16x16x32xbf16, #tpu.memory_space<vmem>>, vector<16x16x32xbf16>
    %43 = arith.extf %42 : vector<16x16x32xbf16> to vector<16x16x32xf32>
    %44 = vector.broadcast %41 : vector<16x16x1xf32> to vector<16x16x32xf32>
    %45 = arith.mulf %44, %43 : vector<16x16x32xf32>
    %cst_24 = arith.constant dense<0.000000e+00> : vector<16x32xf32>
    %46 = vector.multi_reduction <add>, %45, %cst_24 [1] : vector<16x16x32xf32> to vector<16x32xf32>
    %47 = arith.addf %40, %46 : vector<16x32xf32>
    %c0_25 = arith.constant 0 : index
    %c0_26 = arith.constant 0 : index
    %48 = vector.load %arg22[%c0_25, %c0_26] : memref<16x32xf32, #tpu.memory_space<vmem>>, vector<16x32xf32>
    tpu.vector_store %arg22[%c0_25, %c0_26], %47 {strides = array<i32>} : memref<16x32xf32, #tpu.memory_space<vmem>>, vector<16x32xf32>,
    %c0_27 = arith.constant 0 : index
    %c0_28 = arith.constant 0 : index
    %49 = vector.load %arg20[%c0_27, %c0_28] : memref<16x1xf32, #tpu.memory_space<vmem>>, vector<16x1xf32>
    tpu.vector_store %arg20[%c0_27, %c0_28], %26 {strides = array<i32>} : memref<16x1xf32, #tpu.memory_space<vmem>>, vector<16x1xf32>,
    %c0_i32_29 = arith.constant 0 : i32
    %50 = arith.cmpi eq, %arg1, %c0_i32_29 : i32
    %51 = arith.extui %50 : i1 to i32
    %c0_i32_30 = arith.constant 0 : i32
    %52 = arith.cmpi ne, %51, %c0_i32_30 : i32
    scf.if %52 {
      %c0_31 = arith.constant 0 : index
      %c0_32 = arith.constant 0 : index
      %53 = vector.load %arg21[%c0_31, %c0_32] : memref<16x1xf32, #tpu.memory_space<vmem>>, vector<16x1xf32>
      %54 = tpu.reciprocal %53 {approx = true} : vector<16x1xf32> -> vector<16x1xf32>
      %c0_33 = arith.constant 0 : index
      %c0_34 = arith.constant 0 : index
      %55 = vector.load %arg23[%c0_33, %c0_34] : memref<16x16xf32, #tpu.memory_space<vmem>>, vector<16x16xf32>
      %c0_35 = arith.constant 0 : index
      %c0_36 = arith.constant 0 : index
      %56 = vector.load %arg20[%c0_35, %c0_36] : memref<16x1xf32, #tpu.memory_space<vmem>>, vector<16x1xf32>
      %57 = vector.broadcast %56 : vector<16x1xf32> to vector<16x16xf32>
      %58 = arith.subf %55, %57 : vector<16x16xf32>
      %59 = math.exp %58 : vector<16x16xf32>
      %60 = vector.broadcast %54 : vector<16x1xf32> to vector<16x16xf32>
      %61 = arith.mulf %59, %60 : vector<16x16xf32>
      %c0_37 = arith.constant 0 : index
      %c0_38 = arith.constant 0 : index
      %62 = vector.load %arg18[%c0_37, %c0_38] : memref<16x16xf32, #tpu.memory_space<vmem>>, vector<16x16xf32>
      tpu.vector_store %arg18[%c0_37, %c0_38], %61 {strides = array<i32>} : memref<16x16xf32, #tpu.memory_space<vmem>>, vector<16x16xf32>,
      %c0_39 = arith.constant 0 : index
      %c0_40 = arith.constant 0 : index
      %63 = vector.load %arg22[%c0_39, %c0_40] : memref<16x32xf32, #tpu.memory_space<vmem>>, vector<16x32xf32>
      %64 = vector.broadcast %54 : vector<16x1xf32> to vector<16x32xf32>
      %65 = arith.mulf %63, %64 : vector<16x32xf32>
      %66 = arith.truncf %65 : vector<16x32xf32> to vector<16x32xbf16>
      %c0_41 = arith.constant 0 : index
      %c0_42 = arith.constant 0 : index
      %67 = vector.load %arg10[%c0_41, %c0_42] : memref<32x128xbf16, #tpu.memory_space<vmem>>, vector<32x128xbf16>
      %cst_43 = arith.constant dense<0.000000e+00> : vector<16x128xf32>
      %68 = tpu.matmul %66, %67, %cst_43 {dimension_numbers = #tpu.dot_dimension_numbers<[1], [0], [0], [1], [0, 0, 1, 1], [], []>} : vector<16x32xbf16>, vector<32x128xbf16>, vector<16x128xf32> -> vector<16x128xf32>
      %c0_44 = arith.constant 0 : index
      %c0_45 = arith.constant 0 : index
      %69 = vector.load %arg3[%c0_44, %c0_45] : memref<16x32xbf16, #tpu.memory_space<vmem>>, vector<16x32xbf16>
      %c0_46 = arith.constant 0 : index
      %c0_47 = arith.constant 0 : index
      %70 = vector.load %arg11[%c0_46, %c0_47] : memref<32x128xbf16, #tpu.memory_space<vmem>>, vector<32x128xbf16>
      %cst_48 = arith.constant dense<0.000000e+00> : vector<16x128xf32>
      %71 = tpu.matmul %69, %70, %cst_48 {dimension_numbers = #tpu.dot_dimension_numbers<[1], [0], [0], [1], [0, 0, 1, 1], [], []>} : vector<16x32xbf16>, vector<32x128xbf16>, vector<16x128xf32> -> vector<16x128xf32>
      %72 = arith.addf %68, %71 : vector<16x128xf32>
      %c0_49 = arith.constant 0 : index
      %c0_50 = arith.constant 0 : index
      %73 = vector.load %arg12[%c0_49, %c0_50] : memref<1x128xf32, #tpu.memory_space<vmem>>, vector<1x128xf32>
      %74 = vector.broadcast %73 : vector<1x128xf32> to vector<16x128xf32>
      %75 = arith.addf %72, %74 : vector<16x128xf32>
      %c0_51 = arith.constant 0 : index
      %c0_52 = arith.constant 0 : index
      %76 = vector.load %arg2[%c0_51, %c0_52] : memref<16x1xf32, #tpu.memory_space<vmem>>, vector<16x1xf32>
      %c0_53 = arith.constant 0 : index
      %c0_54 = arith.constant 0 : index
      %77 = vector.load %arg9[%c0_53, %c0_54] : memref<1x128xf32, #tpu.memory_space<vmem>>, vector<1x128xf32>
      %78 = vector.broadcast %76 : vector<16x1xf32> to vector<16x128xf32>
      %79 = vector.broadcast %77 : vector<1x128xf32> to vector<16x128xf32>
      %80 = arith.mulf %78, %79 : vector<16x128xf32>
      %81 = arith.addf %75, %80 : vector<16x128xf32>
      %82 = vector.extract_strided_slice %81 {offsets = [0, 0], sizes = [16, 32], strides = [1, 1]} : vector<16x128xf32> to vector<16x32xf32>
      %83 = arith.negf %82 : vector<16x32xf32>
      %84 = math.exp %83 : vector<16x32xf32>
      %cst_55 = arith.constant 1.000000e+00 : f32
      %85 = vector.broadcast %cst_55 : f32 to vector<16x32xf32>
      %86 = arith.addf %85, %84 : vector<16x32xf32>
      %87 = arith.divf %85, %86 : vector<16x32xf32>
      %88 = vector.extract_strided_slice %81 {offsets = [0, 32], sizes = [16, 32], strides = [1, 1]} : vector<16x128xf32> to vector<16x32xf32>
      %89 = arith.negf %88 : vector<16x32xf32>
      %90 = math.exp %89 : vector<16x32xf32>
      %cst_56 = arith.constant 1.000000e+00 : f32
      %91 = vector.broadcast %cst_56 : f32 to vector<16x32xf32>
      %92 = arith.addf %91, %90 : vector<16x32xf32>
      %93 = arith.divf %91, %92 : vector<16x32xf32>
      %94 = vector.extract_strided_slice %81 {offsets = [0, 64], sizes = [16, 32], strides = [1, 1]} : vector<16x128xf32> to vector<16x32xf32>
      %95 = math.tanh %94 : vector<16x32xf32>
      %96 = vector.extract_strided_slice %81 {offsets = [0, 96], sizes = [16, 32], strides = [1, 1]} : vector<16x128xf32> to vector<16x32xf32>
      %97 = arith.negf %96 : vector<16x32xf32>
      %98 = math.exp %97 : vector<16x32xf32>
      %cst_57 = arith.constant 1.000000e+00 : f32
      %99 = vector.broadcast %cst_57 : f32 to vector<16x32xf32>
      %100 = arith.addf %99, %98 : vector<16x32xf32>
      %101 = arith.divf %99, %100 : vector<16x32xf32>
      %c0_58 = arith.constant 0 : index
      %c0_59 = arith.constant 0 : index
      %102 = vector.load %arg4[%c0_58, %c0_59] : memref<16x32xf32, #tpu.memory_space<vmem>>, vector<16x32xf32>
      %103 = arith.mulf %93, %102 : vector<16x32xf32>
      %104 = arith.mulf %87, %95 : vector<16x32xf32>
      %105 = arith.addf %103, %104 : vector<16x32xf32>
      %106 = math.tanh %105 : vector<16x32xf32>
      %107 = arith.mulf %101, %106 : vector<16x32xf32>
      %108 = arith.truncf %107 : vector<16x32xf32> to vector<16x32xbf16>
      %c0_60 = arith.constant 0 : index
      %c0_61 = arith.constant 0 : index
      %109 = vector.load %arg13[%c0_60, %c0_61] : memref<32x1xbf16, #tpu.memory_space<vmem>>, vector<32x1xbf16>
      %cst_62 = arith.constant dense<0.000000e+00> : vector<16x1xf32>
      %110 = tpu.matmul %108, %109, %cst_62 {dimension_numbers = #tpu.dot_dimension_numbers<[1], [0], [0], [1], [0, 0, 1, 1], [], []>} : vector<16x32xbf16>, vector<32x1xbf16>, vector<16x1xf32> -> vector<16x1xf32>
      %c0_63 = arith.constant 0 : index
      %c0_64 = arith.constant 0 : index
      %111 = vector.load %arg14[%c0_63, %c0_64] : memref<1x1xf32, #tpu.memory_space<vmem>>, vector<1x1xf32>
      %112 = vector.broadcast %111 : vector<1x1xf32> to vector<16x1xf32>
      %113 = arith.addf %110, %112 : vector<16x1xf32>
      %c0_65 = arith.constant 0 : index
      %c0_66 = arith.constant 0 : index
      %114 = vector.load %arg15[%c0_65, %c0_66] : memref<16x1xf32, #tpu.memory_space<vmem>>, vector<16x1xf32>
      tpu.vector_store %arg15[%c0_65, %c0_66], %113 {strides = array<i32>} : memref<16x1xf32, #tpu.memory_space<vmem>>, vector<16x1xf32>,
      %c0_67 = arith.constant 0 : index
      %c0_68 = arith.constant 0 : index
      %115 = vector.load %arg16[%c0_67, %c0_68] : memref<16x32xf32, #tpu.memory_space<vmem>>, vector<16x32xf32>
      tpu.vector_store %arg16[%c0_67, %c0_68], %107 {strides = array<i32>} : memref<16x32xf32, #tpu.memory_space<vmem>>, vector<16x32xf32>,
      %c0_69 = arith.constant 0 : index
      %c0_70 = arith.constant 0 : index
      %116 = vector.load %arg17[%c0_69, %c0_70] : memref<16x32xf32, #tpu.memory_space<vmem>>, vector<16x32xf32>
      tpu.vector_store %arg17[%c0_69, %c0_70], %105 {strides = array<i32>} : memref<16x32xf32, #tpu.memory_space<vmem>>, vector<16x32xf32>,
    } else {
    }
    return
  }
  func.func @transform_0(%arg0: i32, %arg1: i32) -> (i32, i32) {
    %c0_i32 = arith.constant 0 : i32
    %c0_i32_0 = arith.constant 0 : i32
    return %arg0, %c0_i32 : i32, i32
  }
  func.func @transform_1(%arg0: i32, %arg1: i32) -> (i32, i32) {
    %c0_i32 = arith.constant 0 : i32
    %c0_i32_0 = arith.constant 0 : i32
    return %arg0, %c0_i32 : i32, i32
  }
  func.func @transform_2(%arg0: i32, %arg1: i32) -> (i32, i32) {
    %c0_i32 = arith.constant 0 : i32
    %c0_i32_0 = arith.constant 0 : i32
    return %arg0, %c0_i32 : i32, i32
  }
  func.func @transform_3(%arg0: i32, %arg1: i32) -> (i32, i32, i32) {
    %c0_i32 = arith.constant 0 : i32
    %c0_i32_0 = arith.constant 0 : i32
    return %arg0, %arg1, %c0_i32 : i32, i32, i32
  }
  func.func @transform_4(%arg0: i32, %arg1: i32) -> (i32, i32, i32) {
    %c0_i32 = arith.constant 0 : i32
    %c0_i32_0 = arith.constant 0 : i32
    return %arg0, %arg1, %c0_i32 : i32, i32, i32
  }
  func.func @transform_5(%arg0: i32, %arg1: i32) -> (i32, i32) {
    %c0_i32 = arith.constant 0 : i32
    %c0_i32_0 = arith.constant 0 : i32
    %c0_i32_1 = arith.constant 0 : i32
    return %c0_i32, %c0_i32_0 : i32, i32
  }
  func.func @transform_6(%arg0: i32, %arg1: i32) -> (i32, i32, i32) {
    %c0_i32 = arith.constant 0 : i32
    %c0_i32_0 = arith.constant 0 : i32
    %c0_i32_1 = arith.constant 0 : i32
    %c0_i32_2 = arith.constant 0 : i32
    return %c0_i32, %c0_i32_0, %c0_i32_1 : i32, i32, i32
  }
  func.func @transform_7(%arg0: i32, %arg1: i32) -> (i32, i32) {
    %c0_i32 = arith.constant 0 : i32
    %c0_i32_0 = arith.constant 0 : i32
    %c0_i32_1 = arith.constant 0 : i32
    return %c0_i32, %c0_i32_0 : i32, i32
  }
  func.func @transform_8(%arg0: i32, %arg1: i32) -> (i32, i32) {
    %c0_i32 = arith.constant 0 : i32
    %c0_i32_0 = arith.constant 0 : i32
    %c0_i32_1 = arith.constant 0 : i32
    return %c0_i32, %c0_i32_0 : i32, i32
  }
  func.func @transform_9(%arg0: i32, %arg1: i32) -> (i32, i32) {
    %c0_i32 = arith.constant 0 : i32
    %c0_i32_0 = arith.constant 0 : i32
    %c0_i32_1 = arith.constant 0 : i32
    return %c0_i32, %c0_i32_0 : i32, i32
  }
  func.func @transform_10(%arg0: i32, %arg1: i32) -> (i32, i32) {
    %c0_i32 = arith.constant 0 : i32
    %c0_i32_0 = arith.constant 0 : i32
    %c0_i32_1 = arith.constant 0 : i32
    return %c0_i32, %c0_i32_0 : i32, i32
  }
  func.func @transform_11(%arg0: i32, %arg1: i32) -> (i32, i32) {
    %c0_i32 = arith.constant 0 : i32
    %c0_i32_0 = arith.constant 0 : i32
    %c0_i32_1 = arith.constant 0 : i32
    return %c0_i32, %c0_i32_0 : i32, i32
  }
  func.func @transform_12(%arg0: i32, %arg1: i32) -> (i32, i32) {
    %c0_i32 = arith.constant 0 : i32
    %c0_i32_0 = arith.constant 0 : i32
    %c0_i32_1 = arith.constant 0 : i32
    return %c0_i32, %c0_i32_0 : i32, i32
  }
  func.func @transform_13(%arg0: i32, %arg1: i32) -> (i32, i32) {
    %c0_i32 = arith.constant 0 : i32
    %c0_i32_0 = arith.constant 0 : i32
    return %arg0, %c0_i32 : i32, i32
  }
  func.func @transform_14(%arg0: i32, %arg1: i32) -> (i32, i32) {
    %c0_i32 = arith.constant 0 : i32
    %c0_i32_0 = arith.constant 0 : i32
    return %arg0, %c0_i32 : i32, i32
  }
  func.func @transform_15(%arg0: i32, %arg1: i32) -> (i32, i32) {
    %c0_i32 = arith.constant 0 : i32
    %c0_i32_0 = arith.constant 0 : i32
    return %arg0, %c0_i32 : i32, i32
  }
  func.func @transform_16(%arg0: i32, %arg1: i32) -> (i32, i32) {
    %c0_i32 = arith.constant 0 : i32
    %c0_i32_0 = arith.constant 0 : i32
    return %arg0, %c0_i32 : i32, i32
  }
}

</mosaic_0001>

<llo_original>
// kernel: tpu_custom_call.1
$region0: #{tpu_custom_call.1}
  #allocation0 [shape = 'u32[]', space=smem, size = 0x4, offset = 0x4, fixed_abs, tag = 'smem constant byte address 0x4 - core index']
  #allocation1 [shape = 'u32[144,128]{1,0:T(1,128)}', space=vmem, size = 0x12000, scoped, tag = 'internal scratch']
  #allocation2 [shape = 'f32[16,32]{1,0:T(8,128)}', space=vmem, size = 0x2000, scoped, tag = 'scratch operand']
  #allocation3 [shape = 'f32[16,1]{1,0:T(8,128)}', space=vmem, size = 0x2000, scoped, tag = 'scratch operand']
  #allocation4 [shape = 'f32[16,1]{1,0:T(8,128)}', space=vmem, size = 0x2000, scoped, tag = 'scratch operand']
  #allocation5 [shape = 'f32[16,32]{1,0:T(8,128)}', space=vmem, size = 0x2000, scoped, tag = 'scratch operand']
  #allocation6 [shape = 'f32[16,16]{1,0:T(8,128)}', space=vmem, size = 0x2000, scoped, tag = 'scratch operand']
  #allocation7 [shape = 'f32[1,1]{1,0:T(1,128)S(1)}', space=vmem, size = 0x200, scoped, tag = 'scoped memory for tpu_custom_call.1']
  %s0 = inlined_call_operand.hbm [shape: f32[16,1], index: 0, kind: input, shape index: {}]
  %s1 = inlined_call_operand.hbm [shape: bf16[16,32], index: 1, kind: input, shape index: {}]
  %s2 = inlined_call_operand.hbm [shape: f32[16,32], index: 2, kind: input, shape index: {}]
  %s3 = inlined_call_operand.hbm [shape: bf16[16,16,32], index: 3, kind: input, shape index: {}]
  %s4 = inlined_call_operand.hbm [shape: bf16[16,16,32], index: 4, kind: input, shape index: {}]
  %s5 = inlined_call_operand.hbm [shape: bf16[32,32], index: 5, kind: input, shape index: {}]
  %s6 = inlined_call_operand.hbm [shape: f32[1,1,32], index: 6, kind: input, shape index: {}]
  %s7 = inlined_call_operand.hbm [shape: f32[1,128], index: 7, kind: input, shape index: {}]
  %s8 = inlined_call_operand.hbm [shape: bf16[32,128], index: 8, kind: input, shape index: {}]
  %s9 = inlined_call_operand.hbm [shape: bf16[32,128], index: 9, kind: input, shape index: {}]
  %s10 = inlined_call_operand.hbm [shape: f32[1,128], index: 10, kind: input, shape index: {}]
  %s11 = inlined_call_operand.hbm [shape: bf16[32,1], index: 11, kind: input, shape index: {}]
  %s12 = inlined_call_operand.<no memory space> [shape: f32[1,1], index: 12, kind: input, shape index: {}]
  %s13 = inlined_call_operand.hbm [shape: f32[16,1], index: 13, kind: output, shape index: {0}]
  %s14 = inlined_call_operand.hbm [shape: f32[16,32], index: 14, kind: output, shape index: {1}]
  %s15 = inlined_call_operand.hbm [shape: f32[16,32], index: 15, kind: output, shape index: {2}]
  %s16 = inlined_call_operand.hbm [shape: f32[16,16], index: 16, kind: output, shape index: {3}]
  %17 = xla_tuple %s13, %s14, %s15, %s16
  %s18 = sld [smem:[#allocation0]]
  $region142: #{tpu_custom_call.1} parent=0
    _
  %s20 = ssub.s32 1, %s18
  %s21 = scalar_select 0, %s20, %s18
  %v22 = vstv %s12
  %23 = vst [vmem:[#allocation7] sm:$0x1] %v22
  $region1: #{tpu_custom_call.1} parent=0
    #allocation8 [shape = 'u8[8192]{0}', space=vmem, size = 0x2000, scoped, tag = 'input window, operand 0, single buffered']
    #allocation9 [shape = 's32[1]{0}', space=sflag, size = 0x4, scoped, tag = 'scoped memory for tpu_custom_call.1']
    #allocation10 [shape = 's32[1]{0}', space=sflag, size = 0x4, scoped, tag = 'scoped memory for tpu_custom_call.1']
    #allocation11 [shape = 'u8[4096]{0}', space=vmem, size = 0x1000, scoped, tag = 'input window, operand 1, single buffered']
    #allocation12 [shape = 's32[1]{0}', space=sflag, size = 0x4, scoped, tag = 'scoped memory for tpu_custom_call.1']
    #allocation13 [shape = 'u8[8192]{0}', space=vmem, size = 0x2000, scoped, tag = 'input window, operand 2, single buffered']
    #allocation14 [shape = 'u8[65536]{0}', space=vmem, size = 0x10000, scoped, tag = 'input window, operand 3, single buffered']
    #allocation15 [shape = 's32[1]{0}', space=sflag, size = 0x4, scoped, tag = 'scoped memory for tpu_custom_call.1']
    #allocation16 [shape = 'u8[65536]{0}', space=vmem, size = 0x10000, scoped, tag = 'input window, operand 4, single buffered']
    #allocation17 [shape = 'u8[8192]{0}', space=vmem, size = 0x2000, scoped, tag = 'input window, operand 5, single buffered']
    #allocation18 [shape = 's32[1]{0}', space=sflag, size = 0x4, scoped, tag = 'scoped memory for tpu_custom_call.1']
    #allocation19 [shape = 'u8[512]{0}', space=vmem, size = 0x400, scoped, tag = 'input window, operand 6, single buffered']
    #allocation20 [shape = 'u8[512]{0}', space=vmem, size = 0x400, scoped, tag = 'input window, operand 7, single buffered']
    #allocation21 [shape = 's32[1]{0}', space=sflag, size = 0x4, scoped, tag = 'scoped memory for tpu_custom_call.1']
    #allocation22 [shape = 'u8[8192]{0}', space=vmem, size = 0x2000, scoped, tag = 'input window, operand 8, single buffered']
    #allocation23 [shape = 'u8[8192]{0}', space=vmem, size = 0x2000, scoped, tag = 'input window, operand 9, single buffered']
    #allocation24 [shape = 's32[1]{0}', space=sflag, size = 0x4, scoped, tag = 'scoped memory for tpu_custom_call.1']
    #allocation25 [shape = 'u8[512]{0}', space=vmem, size = 0x400, scoped, tag = 'input window, operand 10, single buffered']
    #allocation26 [shape = 'u8[8192]{0}', space=vmem, size = 0x2000, scoped, tag = 'input window, operand 11, single buffered']
    #allocation27 [shape = 's32[1]{0}', space=sflag, size = 0x4, scoped, tag = 'scoped memory for tpu_custom_call.1']
    #allocation28 [shape = 'u8[8192]{0}', space=vmem, size = 0x2000, scoped, tag = 'output window, operand 0, single buffered']
    #allocation29 [shape = 'u8[8192]{0}', space=vmem, size = 0x2000, scoped, tag = 'output window, operand 1, single buffered']
    #allocation30 [shape = 's32[1]{0}', space=sflag, size = 0x4, scoped, tag = 'scoped memory for tpu_custom_call.1']
    #allocation31 [shape = 'u8[8192]{0}', space=vmem, size = 0x2000, scoped, tag = 'output window, operand 2, single buffered']
    #allocation32 [shape = 'u8[8192]{0}', space=vmem, size = 0x2000, scoped, tag = 'output window, operand 3, single buffered']
    #allocation33 [shape = 's32[1]{0}', space=sflag, size = 0x4, scoped, tag = 'scoped memory for tpu_custom_call.1']
    %24 = vsyncpa [#allocation9], 0
    %25 = vsyncpa [#allocation12], 0
    %26 = vsyncpa [#allocation15], 0
    %27 = vsyncpa [#allocation18], 0
    %28 = vsyncpa [#allocation21], 0
    %29 = vsyncpa [#allocation24], 0
    %30 = vsyncpa [#allocation27], 0
    %31 = vsyncpa [#allocation10], 0
    %32 = vsyncpa [#allocation30], 0
    %33 = vsyncpa [#allocation33], 0
    // Predicated region
    $region2: #{tpu_custom_call.1} parent=1 // pred_check
      _
    $region3: #{tpu_custom_call.1} parent=1 // pred_check_branch
      %35 = sbr.rel (0) target = $region5
    $region4: #{tpu_custom_call.1} parent=1 // pred_region
      %s37 = ssub.s32 256, 256
      %38 = vsyncadd [#allocation9], %s37
      %s39 = sshll.u32 [#allocation8], 4
      %s40 = int_to_ptr.vmem [resolvable:$true] %s39
      %45 = dma.hbm_to_vmem [thread:$0]  %s0, 256, %s40, [#allocation9], 128, 128, 8
    $region5: #{tpu_custom_call.1} parent=1 // pred_fallthru
      _
    // Predicated region
    $region6: #{tpu_custom_call.1} parent=1 // pred_check
      _
    $region7: #{tpu_custom_call.1} parent=1 // pred_check_branch
      %47 = sbr.rel (0) target = $region9
    $region8: #{tpu_custom_call.1} parent=1 // pred_region
      %s49 = ssub.s32 128, 128
      %50 = vsyncadd [#allocation12], %s49
      %s51 = sshll.u32 [#allocation11], 4
      %s52 = int_to_ptr.vmem [resolvable:$true] %s51
      %57 = dma.hbm_to_vmem [thread:$0]  %s1, 128, %s52, [#allocation12], 64, 64, 4
    $region9: #{tpu_custom_call.1} parent=1 // pred_fallthru
      _
    // Predicated region
    $region10: #{tpu_custom_call.1} parent=1 // pred_check
      _
    $region11: #{tpu_custom_call.1} parent=1 // pred_check_branch
      %59 = sbr.rel (0) target = $region13
    $region12: #{tpu_custom_call.1} parent=1 // pred_region
      %s61 = ssub.s32 256, 256
      %62 = vsyncadd [#allocation12], %s61
      %s63 = sshll.u32 [#allocation13], 4
      %s64 = int_to_ptr.vmem [resolvable:$true] %s63
      %69 = dma.hbm_to_vmem [thread:$0]  %s2, 256, %s64, [#allocation12], 128, 128, 8
    $region13: #{tpu_custom_call.1} parent=1 // pred_fallthru
      _
    // Predicated region
    $region14: #{tpu_custom_call.1} parent=1 // pred_check
      _
    $region15: #{tpu_custom_call.1} parent=1 // pred_check_branch
      %71 = sbr.rel (0) target = $region17
    $region16: #{tpu_custom_call.1} parent=1 // pred_region
      %s73 = ssub.s32 2048, 2048
      %74 = vsyncadd [#allocation15], %s73
      %s75 = sshll.u32 [#allocation14], 4
      %s76 = int_to_ptr.vmem [resolvable:$true] %s75
      %81 = dma.hbm_to_vmem [thread:$0]  %s3, 2048, %s76, [#allocation15], 64, 64, 4
    $region17: #{tpu_custom_call.1} parent=1 // pred_fallthru
      _
    // Predicated region
    $region18: #{tpu_custom_call.1} parent=1 // pred_check
      _
    $region19: #{tpu_custom_call.1} parent=1 // pred_check_branch
      %83 = sbr.rel (0) target = $region21
    $region20: #{tpu_custom_call.1} parent=1 // pred_region
      %s85 = ssub.s32 2048, 2048
      %86 = vsyncadd [#allocation15], %s85
      %s87 = sshll.u32 [#allocation16], 4
      %s88 = int_to_ptr.vmem [resolvable:$true] %s87
      %93 = dma.hbm_to_vmem [thread:$0]  %s4, 2048, %s88, [#allocation15], 64, 64, 4
    $region21: #{tpu_custom_call.1} parent=1 // pred_fallthru
      _
    // Predicated region
    $region22: #{tpu_custom_call.1} parent=1 // pred_check
      _
    $region23: #{tpu_custom_call.1} parent=1 // pred_check_branch
      %95 = sbr.rel (0) target = $region25
    $region24: #{tpu_custom_call.1} parent=1 // pred_region
      %s97 = ssub.s32 256, 256
      %98 = vsyncadd [#allocation18], %s97
      %s99 = sshll.u32 [#allocation17], 4
      %s100 = int_to_ptr.vmem [resolvable:$true] %s99
      %105 = dma.hbm_to_vmem [thread:$0]  %s5, 256, %s100, [#allocation18], 64, 64, 4
    $region25: #{tpu_custom_call.1} parent=1 // pred_fallthru
      _
    // Predicated region
    $region26: #{tpu_custom_call.1} parent=1 // pred_check
      _
    $region27: #{tpu_custom_call.1} parent=1 // pred_check_branch
      %107 = sbr.rel (0) target = $region29
    $region28: #{tpu_custom_call.1} parent=1 // pred_region
      %s109 = ssub.s32 16, 16
      %110 = vsyncadd [#allocation18], %s109
      %s112 = sshll.u32 [#allocation19], 4
      %s113 = int_to_ptr.vmem [resolvable:$true] %s112
      %115 = dma.hbm_to_vmem [thread:$0]  %s6, 16, %s113, [#allocation18]
    $region29: #{tpu_custom_call.1} parent=1 // pred_fallthru
      _
    // Predicated region
    $region30: #{tpu_custom_call.1} parent=1 // pred_check
      _
    $region31: #{tpu_custom_call.1} parent=1 // pred_check_branch
      %117 = sbr.rel (0) target = $region33
    $region32: #{tpu_custom_call.1} parent=1 // pred_region
      %s119 = ssub.s32 16, 16
      %120 = vsyncadd [#allocation21], %s119
      %s122 = sshll.u32 [#allocation20], 4
      %s123 = int_to_ptr.vmem [resolvable:$true] %s122
      %125 = dma.hbm_to_vmem [thread:$0]  %s7, 16, %s123, [#allocation21]
    $region33: #{tpu_custom_call.1} parent=1 // pred_fallthru
      _
    // Predicated region
    $region34: #{tpu_custom_call.1} parent=1 // pred_check
      _
    $region35: #{tpu_custom_call.1} parent=1 // pred_check_branch
      %127 = sbr.rel (0) target = $region37
    $region36: #{tpu_custom_call.1} parent=1 // pred_region
      %s129 = ssub.s32 256, 256
      %130 = vsyncadd [#allocation21], %s129
      %s131 = sshll.u32 [#allocation22], 4
      %s132 = int_to_ptr.vmem [resolvable:$true] %s131
      %137 = dma.hbm_to_vmem [thread:$0]  %s8, 256, %s132, [#allocation21], 64, 64, 4
    $region37: #{tpu_custom_call.1} parent=1 // pred_fallthru
      _
    // Predicated region
    $region38: #{tpu_custom_call.1} parent=1 // pred_check
      _
    $region39: #{tpu_custom_call.1} parent=1 // pred_check_branch
      %139 = sbr.rel (0) target = $region41
    $region40: #{tpu_custom_call.1} parent=1 // pred_region
      %s141 = ssub.s32 256, 256
      %142 = vsyncadd [#allocation24], %s141
      %s143 = sshll.u32 [#allocation23], 4
      %s144 = int_to_ptr.vmem [resolvable:$true] %s143
      %149 = dma.hbm_to_vmem [thread:$0]  %s9, 256, %s144, [#allocation24], 64, 64, 4
    $region41: #{tpu_custom_call.1} parent=1 // pred_fallthru
      _
    // Predicated region
    $region42: #{tpu_custom_call.1} parent=1 // pred_check
      _
    $region43: #{tpu_custom_call.1} parent=1 // pred_check_branch
      %151 = sbr.rel (0) target = $region45
    $region44: #{tpu_custom_call.1} parent=1 // pred_region
      %s153 = ssub.s32 16, 16
      %154 = vsyncadd [#allocation24], %s153
      %s156 = sshll.u32 [#allocation25], 4
      %s157 = int_to_ptr.vmem [resolvable:$true] %s156
      %159 = dma.hbm_to_vmem [thread:$0]  %s10, 16, %s157, [#allocation24]
    $region45: #{tpu_custom_call.1} parent=1 // pred_fallthru
      _
    // Predicated region
    $region46: #{tpu_custom_call.1} parent=1 // pred_check
      _
    $region47: #{tpu_custom_call.1} parent=1 // pred_check_branch
      %161 = sbr.rel (0) target = $region49
    $region48: #{tpu_custom_call.1} parent=1 // pred_region
      %s163 = ssub.s32 256, 256
      %164 = vsyncadd [#allocation27], %s163
      %s165 = sshll.u32 [#allocation26], 4
      %s166 = int_to_ptr.vmem [resolvable:$true] %s165
      %171 = dma.hbm_to_vmem [thread:$0]  %s11, 256, %s166, [#allocation27], 64, 64, 4
    $region49: #{tpu_custom_call.1} parent=1 // pred_fallthru
      _
    // Predicated region
    $region50: #{tpu_custom_call.1} parent=1 // pred_check
      _
    $region51: #{tpu_custom_call.1} parent=1 // pred_check_branch
      %173 = sbr.rel (0) target = $region53
    $region52: #{tpu_custom_call.1} parent=1 // pred_region
      _
    $region53: #{tpu_custom_call.1} parent=1 // pred_fallthru
      _
    // Predicated region
    $region54: #{tpu_custom_call.1} parent=1 // pred_check
      _
    $region55: #{tpu_custom_call.1} parent=1 // pred_check_branch
      %175 = sbr.rel (0) target = $region57
    $region56: #{tpu_custom_call.1} parent=1 // pred_region
      %176 = dma.done [#allocation9], 256
    $region57: #{tpu_custom_call.1} parent=1 // pred_fallthru
      _
    // Predicated region
    $region58: #{tpu_custom_call.1} parent=1 // pred_check
      _
    $region59: #{tpu_custom_call.1} parent=1 // pred_check_branch
      %178 = sbr.rel (0) target = $region61
    $region60: #{tpu_custom_call.1} parent=1 // pred_region
      %179 = dma.done [#allocation12], 128
    $region61: #{tpu_custom_call.1} parent=1 // pred_fallthru
      _
    // Predicated region
    $region62: #{tpu_custom_call.1} parent=1 // pred_check
      _
    $region63: #{tpu_custom_call.1} parent=1 // pred_check_branch
      %181 = sbr.rel (0) target = $region65
    $region64: #{tpu_custom_call.1} parent=1 // pred_region
      %182 = dma.done [#allocation12], 256
    $region65: #{tpu_custom_call.1} parent=1 // pred_fallthru
      _
    // Predicated region
    $region66: #{tpu_custom_call.1} parent=1 // pred_check
      _
    $region67: #{tpu_custom_call.1} parent=1 // pred_check_branch
      %184 = sbr.rel (0) target = $region69
    $region68: #{tpu_custom_call.1} parent=1 // pred_region
      %185 = dma.done [#allocation15], 2048
    $region69: #{tpu_custom_call.1} parent=1 // pred_fallthru
      _
    // Predicated region
    $region70: #{tpu_custom_call.1} parent=1 // pred_check
      _
    $region71: #{tpu_custom_call.1} parent=1 // pred_check_branch
      %187 = sbr.rel (0) target = $region73
    $region72: #{tpu_custom_call.1} parent=1 // pred_region
      %188 = dma.done [#allocation15], 2048
    $region73: #{tpu_custom_call.1} parent=1 // pred_fallthru
      _
    // Predicated region
    $region74: #{tpu_custom_call.1} parent=1 // pred_check
      _
    $region75: #{tpu_custom_call.1} parent=1 // pred_check_branch
      %190 = sbr.rel (0) target = $region77
    $region76: #{tpu_custom_call.1} parent=1 // pred_region
      %191 = dma.done [#allocation18], 256
    $region77: #{tpu_custom_call.1} parent=1 // pred_fallthru
      _
    // Predicated region
    $region78: #{tpu_custom_call.1} parent=1 // pred_check
      _
    $region79: #{tpu_custom_call.1} parent=1 // pred_check_branch
      %193 = sbr.rel (0) target = $region81
    $region80: #{tpu_custom_call.1} parent=1 // pred_region
      %194 = dma.done [#allocation18], 16
    $region81: #{tpu_custom_call.1} parent=1 // pred_fallthru
      _
    // Predicated region
    $region82: #{tpu_custom_call.1} parent=1 // pred_check
      _
    $region83: #{tpu_custom_call.1} parent=1 // pred_check_branch
      %196 = sbr.rel (0) target = $region85
    $region84: #{tpu_custom_call.1} parent=1 // pred_region
      %197 = dma.done [#allocation21], 16
    $region85: #{tpu_custom_call.1} parent=1 // pred_fallthru
      _
    // Predicated region
    $region86: #{tpu_custom_call.1} parent=1 // pred_check
      _
    $region87: #{tpu_custom_call.1} parent=1 // pred_check_branch
      %199 = sbr.rel (0) target = $region89
    $region88: #{tpu_custom_call.1} parent=1 // pred_region
      %200 = dma.done [#allocation21], 256
    $region89: #{tpu_custom_call.1} parent=1 // pred_fallthru
      _
    // Predicated region
    $region90: #{tpu_custom_call.1} parent=1 // pred_check
      _
    $region91: #{tpu_custom_call.1} parent=1 // pred_check_branch
      %202 = sbr.rel (0) target = $region93
    $region92: #{tpu_custom_call.1} parent=1 // pred_region
      %203 = dma.done [#allocation24], 256
    $region93: #{tpu_custom_call.1} parent=1 // pred_fallthru
      _
    // Predicated region
    $region94: #{tpu_custom_call.1} parent=1 // pred_check
      _
    $region95: #{tpu_custom_call.1} parent=1 // pred_check_branch
      %205 = sbr.rel (0) target = $region97
    $region96: #{tpu_custom_call.1} parent=1 // pred_region
      %206 = dma.done [#allocation24], 16
    $region97: #{tpu_custom_call.1} parent=1 // pred_fallthru
      _
    // Predicated region
    $region98: #{tpu_custom_call.1} parent=1 // pred_check
      _
    $region99: #{tpu_custom_call.1} parent=1 // pred_check_branch
      %208 = sbr.rel (0) target = $region101
    $region100: #{tpu_custom_call.1} parent=1 // pred_region
      %209 = dma.done [#allocation27], 256
    $region101: #{tpu_custom_call.1} parent=1 // pred_fallthru
      _
    %p211 = scmp.eq.s32.totalorder 0, 0
    // Predicated region
    $region102: #{tpu_custom_call.1} parent=1 // pred_check
      %p212 = pneg %p211
    $region103: #{tpu_custom_call.1} parent=1 // pred_check_branch
      %214 = sbr.rel (%p212) target = $region105
    $region104: #{tpu_custom_call.1} parent=1 // pred_region
      %v215 = vld [vmem:[#allocation11] sm:$0xf]
      %v216 = vld [vmem:[#allocation11 + $0x4] sm:$0xf]
      %v217 = vld [vmem:[#allocation17] sm:$0xf]
      %v218 = vld [vmem:[#allocation17 + $0x4] sm:$0xf]
      %v219 = vld [vmem:[#allocation17 + $0x8] sm:$0xf]
      %v220 = vld [vmem:[#allocation17 + $0xc] sm:$0xf]
      %v223 = vunpack.c.l.b16 %v215
      %v224 = vunpack.c.l.b16 %v216
      %v225 = vpack.c.b16 %v224, %v223
      %v230 = vunpack.c.l.b16 %v217
      %v231 = vunpack.c.l.b16 %v218
      %v232 = vunpack.c.l.b16 %v219
      %v233 = vunpack.c.l.b16 %v220
      %v234 = vpack.c.b16 %v231, %v230
      %v235 = vpack.c.b16 %v233, %v232
      %vm238 = vcmask 261120
      %v240 = vsel %vm238, %v225, 0
      %242 = vmatprep.subr.bf16.mxu0 0
      %243 = vmatpush1.bf16.msra.mxu0 %v234
      %244 = vmatprep.subr.bf16.mxu0 0
      %245 = vmatpush1.bf16.msra.mxu0 %v235
      %246 = vmatprep.subr.bf16.mxu0 0
      %247 = vmatpush1.bf16.msra.mxu0 0
      %248 = vmatprep.subr.bf16.mxu0 0
      %249 = vmatpush1.bf16.msra.mxu0 0
      %250 = vmatprep.subr.bf16.mxu0 0
      %251 = vmatpush1.bf16.msra.mxu0 0
      %252 = vmatprep.subr.bf16.mxu0 0
      %253 = vmatpush1.bf16.msra.mxu0 0
      %254 = vmatprep.subr.bf16.mxu0 0
      %255 = vmatpush1.bf16.msra.mxu0 0
      %256 = vmatprep.subr.bf16.mxu0 0
      %257 = vmatpush1.bf16.msra.mxu0 0
      %258 = vmatprep.subr.bf16.mxu0 0
      %259 = vmatpush1.bf16.msra.mxu0 0
      %260 = vmatprep.subr.bf16.mxu0 0
      %261 = vmatpush1.bf16.msra.mxu0 0
      %262 = vmatprep.subr.bf16.mxu0 0
      %263 = vmatpush1.bf16.msra.mxu0 0
      %264 = vmatprep.subr.bf16.mxu0 0
      %265 = vmatpush1.bf16.msra.mxu0 0
      %266 = vmatprep.subr.bf16.mxu0 0
      %267 = vmatpush1.bf16.msra.mxu0 0
      %268 = vmatprep.subr.bf16.mxu0 0
      %269 = vmatpush1.bf16.msra.mxu0 0
      %270 = vmatprep.subr.bf16.mxu0 0
      %271 = vmatpush1.bf16.msra.mxu0 0
      %272 = vmatprep.subr.bf16.mxu0 0
      %273 = vmatpush1.bf16.msra.mxu0 0
      %274 = vmatprep.mubr.bf16.mxu0 0
      %275 = vmatmul.mubr.bf16.gmra.mrb[0].mxu0 %v240
      %v276 = vpop.f32.mrb[0].mxu0
      %v277 = vadd.f32 0.0, %v276
      %v278 = vpop.f32.mrb[0].mxu0
      %v279 = vpop.f32.mrb[0].mxu0
      %v280 = vadd.f32 0.0, %v279
      %v281 = vpop.f32.mrb[0].mxu0
      %282 = vdwg.mxu0
      %283 = vst.msk [vmem:[#allocation2] sm:$0xff] %vm238, %v277
      %284 = vst.msk [vmem:[#allocation2 + $0x8] sm:$0xff] %vm238, %v280
      %vm285 = vcmask 7168
      %286 = vst.msk [vmem:[#allocation3] sm:$0xff] %vm285, -inf
      %287 = vst.msk [vmem:[#allocation3 + $0x8] sm:$0xff] %vm285, -inf
      %288 = vst.msk [vmem:[#allocation4] sm:$0xff] %vm285, 0.0
      %289 = vst.msk [vmem:[#allocation4 + $0x8] sm:$0xff] %vm285, 0.0
      %290 = vst.msk [vmem:[#allocation5] sm:$0xff] %vm238, 0.0
      %291 = vst.msk [vmem:[#allocation5 + $0x8] sm:$0xff] %vm238, 0.0
    $region105: #{tpu_custom_call.1} parent=1 // pred_fallthru
      _
    %v292 = vld [vmem:[#allocation2] sm:$0xff]
    %v293 = vld [vmem:[#allocation2 + $0x8] sm:$0xff]
    %v296 = vcombine.high %v292, %v292
    %v298 = vunpack.c.l.s4 1966171168
    %v299 = vunpack.c.0.s8 %v298
    %v300 = vlaneseq
    %v301 = vshrl.u32 %v300, 7
    %v302 = vsub.s32 %v299, %v301
    %v303 = vrot.slane %v292, %v302
    %v305 = vunpack.c.l.s4 1966171168
    %v306 = vunpack.c.0.s8 %v305
    %v307 = vlaneseq
    %v308 = vshrl.u32 %v307, 7
    %v309 = vsub.s32 %v306, %v308
    %v310 = vrot.slane %v296, %v309
    %v311 = vcombine.high %v303, %v303
    %v312 = vcombine.high %v310, %v310
    %v314 = vunpack.c.l.s4 1966171168
    %v315 = vunpack.c.0.s8 %v314
    %v316 = vlaneseq
    %v317 = vshrl.u32 %v316, 7
    %v318 = vsub.s32 %v315, %v317
    %v319 = vrot.slane %v303, %v318
    %v321 = vunpack.c.l.s4 1966171168
    %v322 = vunpack.c.0.s8 %v321
    %v323 = vlaneseq
    %v324 = vshrl.u32 %v323, 7
    %v325 = vsub.s32 %v322, %v324
    %v326 = vrot.slane %v310, %v325
    %v328 = vunpack.c.l.s4 1966171168
    %v329 = vunpack.c.0.s8 %v328
    %v330 = vlaneseq
    %v331 = vshrl.u32 %v330, 7
    %v332 = vsub.s32 %v329, %v331
    %v333 = vrot.slane %v311, %v332
    %v335 = vunpack.c.l.s4 1966171168
    %v336 = vunpack.c.0.s8 %v335
    %v337 = vlaneseq
    %v338 = vshrl.u32 %v337, 7
    %v339 = vsub.s32 %v336, %v338
    %v340 = vrot.slane %v312, %v339
    %v341 = vcombine.high %v319, %v319
    %v342 = vcombine.high %v326, %v326
    %v343 = vcombine.high %v333, %v333
    %v344 = vcombine.high %v340, %v340
    %v345 = vcombine.high %v293, %v293
    %v347 = vunpack.c.l.s4 1966171168
    %v348 = vunpack.c.0.s8 %v347
    %v349 = vlaneseq
    %v350 = vshrl.u32 %v349, 7
    %v351 = vsub.s32 %v348, %v350
    %v352 = vrot.slane %v293, %v351
    %v354 = vunpack.c.l.s4 1966171168
    %v355 = vunpack.c.0.s8 %v354
    %v356 = vlaneseq
    %v357 = vshrl.u32 %v356, 7
    %v358 = vsub.s32 %v355, %v357
    %v359 = vrot.slane %v345, %v358
    %v360 = vcombine.high %v352, %v352
    %v361 = vcombine.high %v359, %v359
    %v363 = vunpack.c.l.s4 1966171168
    %v364 = vunpack.c.0.s8 %v363
    %v365 = vlaneseq
    %v366 = vshrl.u32 %v365, 7
    %v367 = vsub.s32 %v364, %v366
    %v368 = vrot.slane %v352, %v367
    %v370 = vunpack.c.l.s4 1966171168
    %v371 = vunpack.c.0.s8 %v370
    %v372 = vlaneseq
    %v373 = vshrl.u32 %v372, 7
    %v374 = vsub.s32 %v371, %v373
    %v375 = vrot.slane %v359, %v374
    %v377 = vunpack.c.l.s4 1966171168
    %v378 = vunpack.c.0.s8 %v377
    %v379 = vlaneseq
    %v380 = vshrl.u32 %v379, 7
    %v381 = vsub.s32 %v378, %v380
    %v382 = vrot.slane %v360, %v381
    %v384 = vunpack.c.l.s4 1966171168
    %v385 = vunpack.c.0.s8 %v384
    %v386 = vlaneseq
    %v387 = vshrl.u32 %v386, 7
    %v388 = vsub.s32 %v385, %v387
    %v389 = vrot.slane %v361, %v388
    %v390 = vcombine.high %v368, %v368
    %v391 = vcombine.high %v375, %v375
    %v392 = vcombine.high %v382, %v382
    %v393 = vcombine.high %v389, %v389
    %v394 = vld [vmem:[#allocation16] sm:$0xf]
    %v395 = vld [vmem:[#allocation16 + $0x4] sm:$0xf]
    %v396 = vld [vmem:[#allocation16 + $0x8] sm:$0xf]
    %v397 = vld [vmem:[#allocation16 + $0xc] sm:$0xf]
    %v398 = vld [vmem:[#allocation16 + $0x10] sm:$0xf]
    %v399 = vld [vmem:[#allocation16 + $0x14] sm:$0xf]
    %v400 = vld [vmem:[#allocation16 + $0x18] sm:$0xf]
    %v401 = vld [vmem:[#allocation16 + $0x1c] sm:$0xf]
    %v402 = vld [vmem:[#allocation16 + $0x20] sm:$0xf]
    %v403 = vld [vmem:[#allocation16 + $0x24] sm:$0xf]
    %v404 = vld [vmem:[#allocation16 + $0x28] sm:$0xf]
    %v405 = vld [vmem:[#allocation16 + $0x2c] sm:$0xf]
    %v406 = vld [vmem:[#allocation16 + $0x30] sm:$0xf]
    %v407 = vld [vmem:[#allocation16 + $0x34] sm:$0xf]
    %v408 = vld [vmem:[#allocation16 + $0x38] sm:$0xf]
    %v409 = vld [vmem:[#allocation16 + $0x3c] sm:$0xf]
    %v410 = vld [vmem:[#allocation16 + $0x40] sm:$0xf]
    %v411 = vld [vmem:[#allocation16 + $0x44] sm:$0xf]
    %v412 = vld [vmem:[#allocation16 + $0x48] sm:$0xf]
    %v413 = vld [vmem:[#allocation16 + $0x4c] sm:$0xf]
    %v414 = vld [vmem:[#allocation16 + $0x50] sm:$0xf]
    %v415 = vld [vmem:[#allocation16 + $0x54] sm:$0xf]
    %v416 = vld [vmem:[#allocation16 + $0x58] sm:$0xf]
    %v417 = vld [vmem:[#allocation16 + $0x5c] sm:$0xf]
    %v418 = vld [vmem:[#allocation16 + $0x60] sm:$0xf]
    %v419 = vld [vmem:[#allocation16 + $0x64] sm:$0xf]
    %v420 = vld [vmem:[#allocation16 + $0x68] sm:$0xf]
    %v421 = vld [vmem:[#allocation16 + $0x6c] sm:$0xf]
    %v422 = vld [vmem:[#allocation16 + $0x70] sm:$0xf]
    %v423 = vld [vmem:[#allocation16 + $0x74] sm:$0xf]
    %v424 = vld [vmem:[#allocation16 + $0x78] sm:$0xf]
    %v425 = vld [vmem:[#allocation16 + $0x7c] sm:$0xf]
    %v426 = vunpack.c.l.bf16 %v394
    %v427 = vunpack.c.l.bf16 %v395
    %v428 = vunpack.c.l.bf16 %v396
    %v429 = vunpack.c.l.bf16 %v397
    %v430 = vunpack.c.l.bf16 %v398
    %v431 = vunpack.c.l.bf16 %v399
    %v432 = vunpack.c.l.bf16 %v400
    %v433 = vunpack.c.l.bf16 %v401
    %v434 = vunpack.c.l.bf16 %v402
    %v435 = vunpack.c.l.bf16 %v403
    %v436 = vunpack.c.l.bf16 %v404
    %v437 = vunpack.c.l.bf16 %v405
    %v438 = vunpack.c.l.bf16 %v406
    %v439 = vunpack.c.l.bf16 %v407
    %v440 = vunpack.c.l.bf16 %v408
    %v441 = vunpack.c.l.bf16 %v409
    %v442 = vunpack.c.l.bf16 %v410
    %v443 = vunpack.c.l.bf16 %v411
    %v444 = vunpack.c.l.bf16 %v412
    %v445 = vunpack.c.l.bf16 %v413
    %v446 = vunpack.c.l.bf16 %v414
    %v447 = vunpack.c.l.bf16 %v415
    %v448 = vunpack.c.l.bf16 %v416
    %v449 = vunpack.c.l.bf16 %v417
    %v450 = vunpack.c.l.bf16 %v418
    %v451 = vunpack.c.l.bf16 %v419
    %v452 = vunpack.c.l.bf16 %v420
    %v453 = vunpack.c.l.bf16 %v421
    %v454 = vunpack.c.l.bf16 %v422
    %v455 = vunpack.c.l.bf16 %v423
    %v456 = vunpack.c.l.bf16 %v424
    %v457 = vunpack.c.l.bf16 %v425
    %v458 = vlaneseq
    %v459 = vshrl.u32 %v458, 7
    %v460 = vsub.s32 0, %v459
    %v461 = vrot.slane %v319, %v460
    %v462 = vlaneseq
    %v463 = vshrl.u32 %v462, 7
    %v464 = vsub.s32 0, %v463
    %v465 = vrot.slane %v333, %v464
    %v466 = vlaneseq
    %v467 = vshrl.u32 %v466, 7
    %v468 = vsub.s32 0, %v467
    %v469 = vrot.slane %v341, %v468
    %v470 = vlaneseq
    %v471 = vshrl.u32 %v470, 7
    %v472 = vsub.s32 0, %v471
    %v473 = vrot.slane %v343, %v472
    %v474 = vlaneseq
    %v475 = vshrl.u32 %v474, 7
    %v476 = vsub.s32 0, %v475
    %v477 = vrot.slane %v326, %v476
    %v478 = vlaneseq
    %v479 = vshrl.u32 %v478, 7
    %v480 = vsub.s32 0, %v479
    %v481 = vrot.slane %v340, %v480
    %v482 = vlaneseq
    %v483 = vshrl.u32 %v482, 7
    %v484 = vsub.s32 0, %v483
    %v485 = vrot.slane %v342, %v484
    %v486 = vlaneseq
    %v487 = vshrl.u32 %v486, 7
    %v488 = vsub.s32 0, %v487
    %v489 = vrot.slane %v344, %v488
    %v490 = vlaneseq
    %v491 = vshrl.u32 %v490, 7
    %v492 = vsub.s32 0, %v491
    %v493 = vrot.slane %v368, %v492
    %v494 = vlaneseq
    %v495 = vshrl.u32 %v494, 7
    %v496 = vsub.s32 0, %v495
    %v497 = vrot.slane %v382, %v496
    %v498 = vlaneseq
    %v499 = vshrl.u32 %v498, 7
    %v500 = vsub.s32 0, %v499
    %v501 = vrot.slane %v390, %v500
    %v502 = vlaneseq
    %v503 = vshrl.u32 %v502, 7
    %v504 = vsub.s32 0, %v503
    %v505 = vrot.slane %v392, %v504
    %v506 = vlaneseq
    %v507 = vshrl.u32 %v506, 7
    %v508 = vsub.s32 0, %v507
    %v509 = vrot.slane %v375, %v508
    %v510 = vlaneseq
    %v511 = vshrl.u32 %v510, 7
    %v512 = vsub.s32 0, %v511
    %v513 = vrot.slane %v389, %v512
    %v514 = vlaneseq
    %v515 = vshrl.u32 %v514, 7
    %v516 = vsub.s32 0, %v515
    %v517 = vrot.slane %v391, %v516
    %v518 = vlaneseq
    %v519 = vshrl.u32 %v518, 7
    %v520 = vsub.s32 0, %v519
    %v521 = vrot.slane %v393, %v520
    %v538 = vadd.f32 %v461, %v426
    %v539 = vadd.f32 %v461, %v427
    %v540 = vadd.f32 %v465, %v428
    %v541 = vadd.f32 %v465, %v429
    %v542 = vadd.f32 %v469, %v430
    %v543 = vadd.f32 %v469, %v431
    %v544 = vadd.f32 %v473, %v432
    %v545 = vadd.f32 %v473, %v433
    %v546 = vadd.f32 %v477, %v434
    %v547 = vadd.f32 %v477, %v435
    %v548 = vadd.f32 %v481, %v436
    %v549 = vadd.f32 %v481, %v437
    %v550 = vadd.f32 %v485, %v438
    %v551 = vadd.f32 %v485, %v439
    %v552 = vadd.f32 %v489, %v440
    %v553 = vadd.f32 %v489, %v441
    %v554 = vadd.f32 %v493, %v442
    %v555 = vadd.f32 %v493, %v443
    %v556 = vadd.f32 %v497, %v444
    %v557 = vadd.f32 %v497, %v445
    %v558 = vadd.f32 %v501, %v446
    %v559 = vadd.f32 %v501, %v447
    %v560 = vadd.f32 %v505, %v448
    %v561 = vadd.f32 %v505, %v449
    %v562 = vadd.f32 %v509, %v450
    %v563 = vadd.f32 %v509, %v451
    %v564 = vadd.f32 %v513, %v452
    %v565 = vadd.f32 %v513, %v453
    %v566 = vadd.f32 %v517, %v454
    %v567 = vadd.f32 %v517, %v455
    %v568 = vadd.f32 %v521, %v456
    %v569 = vadd.f32 %v521, %v457
    %v570 = vtanh.pop %v538
    %v571 = vtanh.pop %v539
    %v572 = vtanh.pop %v540
    %v573 = vtanh.pop %v541
    %v574 = vtanh.pop %v542
    %v575 = vtanh.pop %v543
    %v576 = vtanh.pop %v544
    %v577 = vtanh.pop %v545
    %v578 = vtanh.pop %v546
    %v579 = vtanh.pop %v547
    %v580 = vtanh.pop %v548
    %v581 = vtanh.pop %v549
    %v582 = vtanh.pop %v550
    %v583 = vtanh.pop %v551
    %v584 = vtanh.pop %v552
    %v585 = vtanh.pop %v553
    %v586 = vtanh.pop %v554
    %v587 = vtanh.pop %v555
    %v588 = vtanh.pop %v556
    %v589 = vtanh.pop %v557
    %v590 = vtanh.pop %v558
    %v591 = vtanh.pop %v559
    %v592 = vtanh.pop %v560
    %v593 = vtanh.pop %v561
    %v594 = vtanh.pop %v562
    %v595 = vtanh.pop %v563
    %v596 = vtanh.pop %v564
    %v597 = vtanh.pop %v565
    %v598 = vtanh.pop %v566
    %v599 = vtanh.pop %v567
    %v600 = vtanh.pop %v568
    %v601 = vtanh.pop %v569
    %v602 = vld [vmem:[#allocation19] sm:$0x1]
    %v604 = vlaneseq
    %v605 = vshrl.u32 %v604, 7
    %v606 = vsub.s32 0, %v605
    %v607 = vrot.slane %v602, %v606
    %v609 = vmul.f32 %v570, %v607
    %v610 = vmul.f32 %v571, %v607
    %v611 = vmul.f32 %v572, %v607
    %v612 = vmul.f32 %v573, %v607
    %v613 = vmul.f32 %v574, %v607
    %v614 = vmul.f32 %v575, %v607
    %v615 = vmul.f32 %v576, %v607
    %v616 = vmul.f32 %v577, %v607
    %v617 = vmul.f32 %v578, %v607
    %v618 = vmul.f32 %v579, %v607
    %v619 = vmul.f32 %v580, %v607
    %v620 = vmul.f32 %v581, %v607
    %v621 = vmul.f32 %v582, %v607
    %v622 = vmul.f32 %v583, %v607
    %v623 = vmul.f32 %v584, %v607
    %v624 = vmul.f32 %v585, %v607
    %v625 = vmul.f32 %v586, %v607
    %v626 = vmul.f32 %v587, %v607
    %v627 = vmul.f32 %v588, %v607
    %v628 = vmul.f32 %v589, %v607
    %v629 = vmul.f32 %v590, %v607
    %v630 = vmul.f32 %v591, %v607
    %v631 = vmul.f32 %v592, %v607
    %v632 = vmul.f32 %v593, %v607
    %v633 = vmul.f32 %v594, %v607
    %v634 = vmul.f32 %v595, %v607
    %v635 = vmul.f32 %v596, %v607
    %v636 = vmul.f32 %v597, %v607
    %v637 = vmul.f32 %v598, %v607
    %v638 = vmul.f32 %v599, %v607
    %v639 = vmul.f32 %v600, %v607
    %v640 = vmul.f32 %v601, %v607
    %vm641 = vcmask 261120
    %v642 = vsel %vm641, %v609, 0.0
    %643 = vadd.xlane.f32.xlu0 %v642
    %v644 = vpop.xlane.xlu0 %643
    %v645 = vsel %vm641, %v610, 0.0
    %646 = vadd.xlane.f32.xlu0 %v645
    %v647 = vpop.xlane.xlu0 %646
    %v648 = vsel %vm641, %v611, 0.0
    %649 = vadd.xlane.f32.xlu0 %v648
    %v650 = vpop.xlane.xlu0 %649
    %v651 = vsel %vm641, %v612, 0.0
    %652 = vadd.xlane.f32.xlu0 %v651
    %v653 = vpop.xlane.xlu0 %652
    %v654 = vsel %vm641, %v613, 0.0
    %655 = vadd.xlane.f32.xlu0 %v654
    %v656 = vpop.xlane.xlu0 %655
    %v657 = vsel %vm641, %v614, 0.0
    %658 = vadd.xlane.f32.xlu0 %v657
    %v659 = vpop.xlane.xlu0 %658
    %v660 = vsel %vm641, %v615, 0.0
    %661 = vadd.xlane.f32.xlu0 %v660
    %v662 = vpop.xlane.xlu0 %661
    %v663 = vsel %vm641, %v616, 0.0
    %664 = vadd.xlane.f32.xlu0 %v663
    %v665 = vpop.xlane.xlu0 %664
    %v666 = vsel %vm641, %v617, 0.0
    %667 = vadd.xlane.f32.xlu0 %v666
    %v668 = vpop.xlane.xlu0 %667
    %v669 = vsel %vm641, %v618, 0.0
    %670 = vadd.xlane.f32.xlu0 %v669
    %v671 = vpop.xlane.xlu0 %670
    %v672 = vsel %vm641, %v619, 0.0
    %673 = vadd.xlane.f32.xlu0 %v672
    %v674 = vpop.xlane.xlu0 %673
    %v675 = vsel %vm641, %v620, 0.0
    %676 = vadd.xlane.f32.xlu0 %v675
    %v677 = vpop.xlane.xlu0 %676
    %v678 = vsel %vm641, %v621, 0.0
    %679 = vadd.xlane.f32.xlu0 %v678
    %v680 = vpop.xlane.xlu0 %679
    %v681 = vsel %vm641, %v622, 0.0
    %682 = vadd.xlane.f32.xlu0 %v681
    %v683 = vpop.xlane.xlu0 %682
    %v684 = vsel %vm641, %v623, 0.0
    %685 = vadd.xlane.f32.xlu0 %v684
    %v686 = vpop.xlane.xlu0 %685
    %v687 = vsel %vm641, %v624, 0.0
    %688 = vadd.xlane.f32.xlu0 %v687
    %v689 = vpop.xlane.xlu0 %688
    %v690 = vsel %vm641, %v625, 0.0
    %691 = vadd.xlane.f32.xlu0 %v690
    %v692 = vpop.xlane.xlu0 %691
    %v693 = vsel %vm641, %v626, 0.0
    %694 = vadd.xlane.f32.xlu0 %v693
    %v695 = vpop.xlane.xlu0 %694
    %v696 = vsel %vm641, %v627, 0.0
    %697 = vadd.xlane.f32.xlu0 %v696
    %v698 = vpop.xlane.xlu0 %697
    %v699 = vsel %vm641, %v628, 0.0
    %700 = vadd.xlane.f32.xlu0 %v699
    %v701 = vpop.xlane.xlu0 %700
    %v702 = vsel %vm641, %v629, 0.0
    %703 = vadd.xlane.f32.xlu0 %v702
    %v704 = vpop.xlane.xlu0 %703
    %v705 = vsel %vm641, %v630, 0.0
    %706 = vadd.xlane.f32.xlu0 %v705
    %v707 = vpop.xlane.xlu0 %706
    %v708 = vsel %vm641, %v631, 0.0
    %709 = vadd.xlane.f32.xlu0 %v708
    %v710 = vpop.xlane.xlu0 %709
    %v711 = vsel %vm641, %v632, 0.0
    %712 = vadd.xlane.f32.xlu0 %v711
    %v713 = vpop.xlane.xlu0 %712
    %v714 = vsel %vm641, %v633, 0.0
    %715 = vadd.xlane.f32.xlu0 %v714
    %v716 = vpop.xlane.xlu0 %715
    %v717 = vsel %vm641, %v634, 0.0
    %718 = vadd.xlane.f32.xlu0 %v717
    %v719 = vpop.xlane.xlu0 %718
    %v720 = vsel %vm641, %v635, 0.0
    %721 = vadd.xlane.f32.xlu0 %v720
    %v722 = vpop.xlane.xlu0 %721
    %v723 = vsel %vm641, %v636, 0.0
    %724 = vadd.xlane.f32.xlu0 %v723
    %v725 = vpop.xlane.xlu0 %724
    %v726 = vsel %vm641, %v637, 0.0
    %727 = vadd.xlane.f32.xlu0 %v726
    %v728 = vpop.xlane.xlu0 %727
    %v729 = vsel %vm641, %v638, 0.0
    %730 = vadd.xlane.f32.xlu0 %v729
    %v731 = vpop.xlane.xlu0 %730
    %v732 = vsel %vm641, %v639, 0.0
    %733 = vadd.xlane.f32.xlu0 %v732
    %v734 = vpop.xlane.xlu0 %733
    %v735 = vsel %vm641, %v640, 0.0
    %736 = vadd.xlane.f32.xlu0 %v735
    %v737 = vpop.xlane.xlu0 %736
    %s738 = smul.u32 0, 16
    %v739 = vlaneseq
    %v740 = vand.u32 %v739, 127
    %v741 = vstv %s738
    %v742 = vadd.s32 %v741, %v740
    %vm743 = vcmp.lt.s32.totalorder %v742, 8
    %v776 = vlaneseq
    %v777 = vshrl.u32 %v776, 7
    %v778 = vsub.s32 %v740, %v777
    %v779 = vrot.slane %v644, %v778
    %v780 = vadd.s32 %v740, 4294967288
    %v781 = vlaneseq
    %v782 = vshrl.u32 %v781, 7
    %v783 = vsub.s32 %v780, %v782
    %v784 = vrot.slane %v647, %v783
    %vm785 = vcmask 130112
    %v786 = vsel %vm785, %v784, %v779
    %v787 = vlaneseq
    %v788 = vshrl.u32 %v787, 7
    %v789 = vsub.s32 %v740, %v788
    %v790 = vrot.slane %v650, %v789
    %v791 = vlaneseq
    %v792 = vshrl.u32 %v791, 7
    %v793 = vsub.s32 %v780, %v792
    %v794 = vrot.slane %v653, %v793
    %v795 = vsel %vm785, %v794, %v790
    %v796 = vlaneseq
    %v797 = vshrl.u32 %v796, 7
    %v798 = vsub.s32 %v740, %v797
    %v799 = vrot.slane %v656, %v798
    %v800 = vlaneseq
    %v801 = vshrl.u32 %v800, 7
    %v802 = vsub.s32 %v780, %v801
    %v803 = vrot.slane %v659, %v802
    %v804 = vsel %vm785, %v803, %v799
    %v805 = vlaneseq
    %v806 = vshrl.u32 %v805, 7
    %v807 = vsub.s32 %v740, %v806
    %v808 = vrot.slane %v662, %v807
    %v809 = vlaneseq
    %v810 = vshrl.u32 %v809, 7
    %v811 = vsub.s32 %v780, %v810
    %v812 = vrot.slane %v665, %v811
    %v813 = vsel %vm785, %v812, %v808
    %v814 = vlaneseq
    %v815 = vshrl.u32 %v814, 7
    %v816 = vsub.s32 %v740, %v815
    %v817 = vrot.slane %v668, %v816
    %v818 = vlaneseq
    %v819 = vshrl.u32 %v818, 7
    %v820 = vsub.s32 %v780, %v819
    %v821 = vrot.slane %v671, %v820
    %v822 = vsel %vm785, %v821, %v817
    %v823 = vlaneseq
    %v824 = vshrl.u32 %v823, 7
    %v825 = vsub.s32 %v740, %v824
    %v826 = vrot.slane %v674, %v825
    %v827 = vlaneseq
    %v828 = vshrl.u32 %v827, 7
    %v829 = vsub.s32 %v780, %v828
    %v830 = vrot.slane %v677, %v829
    %v831 = vsel %vm785, %v830, %v826
    %v832 = vlaneseq
    %v833 = vshrl.u32 %v832, 7
    %v834 = vsub.s32 %v740, %v833
    %v835 = vrot.slane %v680, %v834
    %v836 = vlaneseq
    %v837 = vshrl.u32 %v836, 7
    %v838 = vsub.s32 %v780, %v837
    %v839 = vrot.slane %v683, %v838
    %v840 = vsel %vm785, %v839, %v835
    %v841 = vlaneseq
    %v842 = vshrl.u32 %v841, 7
    %v843 = vsub.s32 %v740, %v842
    %v844 = vrot.slane %v686, %v843
    %v845 = vlaneseq
    %v846 = vshrl.u32 %v845, 7
    %v847 = vsub.s32 %v780, %v846
    %v848 = vrot.slane %v689, %v847
    %v849 = vsel %vm785, %v848, %v844
    %v850 = vlaneseq
    %v851 = vshrl.u32 %v850, 7
    %v852 = vsub.s32 %v740, %v851
    %v853 = vrot.slane %v692, %v852
    %v854 = vlaneseq
    %v855 = vshrl.u32 %v854, 7
    %v856 = vsub.s32 %v780, %v855
    %v857 = vrot.slane %v695, %v856
    %v858 = vsel %vm785, %v857, %v853
    %v859 = vlaneseq
    %v860 = vshrl.u32 %v859, 7
    %v861 = vsub.s32 %v740, %v860
    %v862 = vrot.slane %v698, %v861
    %v863 = vlaneseq
    %v864 = vshrl.u32 %v863, 7
    %v865 = vsub.s32 %v780, %v864
    %v866 = vrot.slane %v701, %v865
    %v867 = vsel %vm785, %v866, %v862
    %v868 = vlaneseq
    %v869 = vshrl.u32 %v868, 7
    %v870 = vsub.s32 %v740, %v869
    %v871 = vrot.slane %v704, %v870
    %v872 = vlaneseq
    %v873 = vshrl.u32 %v872, 7
    %v874 = vsub.s32 %v780, %v873
    %v875 = vrot.slane %v707, %v874
    %v876 = vsel %vm785, %v875, %v871
    %v877 = vlaneseq
    %v878 = vshrl.u32 %v877, 7
    %v879 = vsub.s32 %v740, %v878
    %v880 = vrot.slane %v710, %v879
    %v881 = vlaneseq
    %v882 = vshrl.u32 %v881, 7
    %v883 = vsub.s32 %v780, %v882
    %v884 = vrot.slane %v713, %v883
    %v885 = vsel %vm785, %v884, %v880
    %v886 = vlaneseq
    %v887 = vshrl.u32 %v886, 7
    %v888 = vsub.s32 %v740, %v887
    %v889 = vrot.slane %v716, %v888
    %v890 = vlaneseq
    %v891 = vshrl.u32 %v890, 7
    %v892 = vsub.s32 %v780, %v891
    %v893 = vrot.slane %v719, %v892
    %v894 = vsel %vm785, %v893, %v889
    %v895 = vlaneseq
    %v896 = vshrl.u32 %v895, 7
    %v897 = vsub.s32 %v740, %v896
    %v898 = vrot.slane %v722, %v897
    %v899 = vlaneseq
    %v900 = vshrl.u32 %v899, 7
    %v901 = vsub.s32 %v780, %v900
    %v902 = vrot.slane %v725, %v901
    %v903 = vsel %vm785, %v902, %v898
    %v904 = vlaneseq
    %v905 = vshrl.u32 %v904, 7
    %v906 = vsub.s32 %v740, %v905
    %v907 = vrot.slane %v728, %v906
    %v908 = vlaneseq
    %v909 = vshrl.u32 %v908, 7
    %v910 = vsub.s32 %v780, %v909
    %v911 = vrot.slane %v731, %v910
    %v912 = vsel %vm785, %v911, %v907
    %v913 = vlaneseq
    %v914 = vshrl.u32 %v913, 7
    %v915 = vsub.s32 %v740, %v914
    %v916 = vrot.slane %v734, %v915
    %v917 = vlaneseq
    %v918 = vshrl.u32 %v917, 7
    %v919 = vsub.s32 %v780, %v918
    %v920 = vrot.slane %v737, %v919
    %v921 = vsel %vm785, %v920, %v916
    %vm922 = vcmask 1041409
    %v923 = vsel %vm922, %v795, %v786
    %vm924 = vcmask 1042434
    %v925 = vsel %vm924, %v804, %v923
    %vm926 = vcmask 1043459
    %v927 = vsel %vm926, %v813, %v925
    %vm928 = vcmask 1044484
    %v929 = vsel %vm928, %v822, %v927
    %vm930 = vcmask 1045509
    %v931 = vsel %vm930, %v831, %v929
    %vm932 = vcmask 1046534
    %v933 = vsel %vm932, %v840, %v931
    %vm934 = vcmask 1047559
    %v935 = vsel %vm934, %v849, %v933
    %v936 = vsel %vm922, %v867, %v858
    %v937 = vsel %vm924, %v876, %v936
    %v938 = vsel %vm926, %v885, %v937
    %v939 = vsel %vm928, %v894, %v938
    %v940 = vsel %vm930, %v903, %v939
    %v941 = vsel %vm932, %v912, %v940
    %v942 = vsel %vm934, %v921, %v941
    %v945 = vsel %vm743, %v935, -inf
    %v946 = vsel %vm743, %v942, -inf
    %vm947 = vcmask 130048
    %948 = vst.msk [vmem:[#allocation6] sm:$0xff] %vm947, %v945
    %949 = vst.msk [vmem:[#allocation6 + $0x8] sm:$0xff] %vm947, %v946
    %v950 = vld [vmem:[#allocation3] sm:$0xff]
    %v951 = vld [vmem:[#allocation3 + $0x8] sm:$0xff]
    %v952 = vsel %vm947, %v945, -inf
    %953 = vmax.xlane.f32.xlu0 %v952
    %v954 = vpop.xlane.xlu0 %953
    %v955 = vsel %vm947, %v946, -inf
    %956 = vmax.xlane.f32.xlu0 %v955
    %v957 = vpop.xlane.xlu0 %956
    %v958 = vmax.f32 %v950, %v954
    %v959 = vmax.f32 %v951, %v957
    %v960 = vsub.f32 %v950, %v958
    %v961 = vsub.f32 %v951, %v959
    %v962 = vmul.f32 %v960, 1.442695
    %v963 = vpow.pop %v962
    %v964 = vmul.f32 %v961, 1.442695
    %v965 = vpow.pop %v964
    %967 = vset.pattern.permute.xlu0 0
    %968 = vperm.xlu0 %967, %v958
    %v969 = vpop.permute.xlu0 %968
    %972 = vset.pattern.permute.xlu0 0
    %973 = vperm.xlu0 %972, %v959
    %v974 = vpop.permute.xlu0 %973
    %v976 = vsub.f32 %v945, %v969
    %v977 = vsub.f32 %v946, %v974
    %v978 = vmul.f32 %v976, 1.442695
    %v979 = vpow.pop %v978
    %v980 = vmul.f32 %v977, 1.442695
    %v981 = vpow.pop %v980
    %v982 = vld [vmem:[#allocation4] sm:$0xff]
    %v983 = vld [vmem:[#allocation4 + $0x8] sm:$0xff]
    %v984 = vmul.f32 %v963, %v982
    %v985 = vmul.f32 %v965, %v983
    %v986 = vsel %vm947, %v979, 0.0
    %987 = vadd.xlane.f32.xlu0 %v986
    %v988 = vpop.xlane.xlu0 %987
    %v989 = vsel %vm947, %v981, 0.0
    %990 = vadd.xlane.f32.xlu0 %v989
    %v991 = vpop.xlane.xlu0 %990
    %v992 = vadd.f32 %v984, %v988
    %v993 = vadd.f32 %v985, %v991
    %vm994 = vcmask 7168
    %995 = vst.msk [vmem:[#allocation4] sm:$0xff] %vm994, %v992
    %996 = vst.msk [vmem:[#allocation4 + $0x8] sm:$0xff] %vm994, %v993
    %v997 = vld [vmem:[#allocation5] sm:$0xff]
    %v998 = vld [vmem:[#allocation5 + $0x8] sm:$0xff]
    %1000 = vset.pattern.permute.xlu0 0
    %1001 = vperm.xlu0 %1000, %v963
    %v1002 = vpop.permute.xlu0 %1001
    %1005 = vset.pattern.permute.xlu0 0
    %1006 = vperm.xlu0 %1005, %v965
    %v1007 = vpop.permute.xlu0 %1006
    %v1009 = vmul.f32 %v1002, %v997
    %v1010 = vmul.f32 %v1007, %v998
    %v1011 = vlaneseq
    %v1012 = vshrl.u32 %v1011, 7
    %v1013 = vsub.s32 0, %v1012
    %v1014 = vrot.slane %v979, %v1013
    %1016 = vbcast.lane.b32.xlu0 %v1014, 256
    %v1017 = vpop.permute.xlu0 %1016
    %s1019 = sor.u32 256, 8
    %1020 = vbcast.lane.b32.xlu0 %v1014, %s1019
    %v1021 = vpop.permute.xlu0 %1020
    %v1022 = vlaneseq
    %v1023 = vshrl.u32 %v1022, 7
    %v1024 = vsub.s32 1, %v1023
    %v1025 = vrot.slane %v979, %v1024
    %1027 = vbcast.lane.b32.xlu0 %v1025, 256
    %v1028 = vpop.permute.xlu0 %1027
    %s1030 = sor.u32 256, 8
    %1031 = vbcast.lane.b32.xlu0 %v1025, %s1030
    %v1032 = vpop.permute.xlu0 %1031
    %v1033 = vlaneseq
    %v1034 = vshrl.u32 %v1033, 7
    %v1035 = vsub.s32 2, %v1034
    %v1036 = vrot.slane %v979, %v1035
    %1038 = vbcast.lane.b32.xlu0 %v1036, 256
    %v1039 = vpop.permute.xlu0 %1038
    %s1041 = sor.u32 256, 8
    %1042 = vbcast.lane.b32.xlu0 %v1036, %s1041
    %v1043 = vpop.permute.xlu0 %1042
    %v1044 = vlaneseq
    %v1045 = vshrl.u32 %v1044, 7
    %v1046 = vsub.s32 3, %v1045
    %v1047 = vrot.slane %v979, %v1046
    %1049 = vbcast.lane.b32.xlu0 %v1047, 256
    %v1050 = vpop.permute.xlu0 %1049
    %s1052 = sor.u32 256, 8
    %1053 = vbcast.lane.b32.xlu0 %v1047, %s1052
    %v1054 = vpop.permute.xlu0 %1053
    %v1055 = vlaneseq
    %v1056 = vshrl.u32 %v1055, 7
    %v1057 = vsub.s32 4, %v1056
    %v1058 = vrot.slane %v979, %v1057
    %1060 = vbcast.lane.b32.xlu0 %v1058, 256
    %v1061 = vpop.permute.xlu0 %1060
    %s1063 = sor.u32 256, 8
    %1064 = vbcast.lane.b32.xlu0 %v1058, %s1063
    %v1065 = vpop.permute.xlu0 %1064
    %v1066 = vlaneseq
    %v1067 = vshrl.u32 %v1066, 7
    %v1068 = vsub.s32 5, %v1067
    %v1069 = vrot.slane %v979, %v1068
    %1071 = vbcast.lane.b32.xlu0 %v1069, 256
    %v1072 = vpop.permute.xlu0 %1071
    %s1074 = sor.u32 256, 8
    %1075 = vbcast.lane.b32.xlu0 %v1069, %s1074
    %v1076 = vpop.permute.xlu0 %1075
    %v1077 = vlaneseq
    %v1078 = vshrl.u32 %v1077, 7
    %v1079 = vsub.s32 6, %v1078
    %v1080 = vrot.slane %v979, %v1079
    %1082 = vbcast.lane.b32.xlu0 %v1080, 256
    %v1083 = vpop.permute.xlu0 %1082
    %s1085 = sor.u32 256, 8
    %1086 = vbcast.lane.b32.xlu0 %v1080, %s1085
    %v1087 = vpop.permute.xlu0 %1086
    %v1088 = vlaneseq
    %v1089 = vshrl.u32 %v1088, 7
    %v1090 = vsub.s32 7, %v1089
    %v1091 = vrot.slane %v979, %v1090
    %1093 = vbcast.lane.b32.xlu0 %v1091, 256
    %v1094 = vpop.permute.xlu0 %1093
    %s1096 = sor.u32 256, 8
    %1097 = vbcast.lane.b32.xlu0 %v1091, %s1096
    %v1098 = vpop.permute.xlu0 %1097
    %v1099 = vlaneseq
    %v1100 = vshrl.u32 %v1099, 7
    %v1101 = vsub.s32 0, %v1100
    %v1102 = vrot.slane %v981, %v1101
    %1104 = vbcast.lane.b32.xlu0 %v1102, 256
    %v1105 = vpop.permute.xlu0 %1104
    %s1107 = sor.u32 256, 8
    %1108 = vbcast.lane.b32.xlu0 %v1102, %s1107
    %v1109 = vpop.permute.xlu0 %1108
    %v1110 = vlaneseq
    %v1111 = vshrl.u32 %v1110, 7
    %v1112 = vsub.s32 1, %v1111
    %v1113 = vrot.slane %v981, %v1112
    %1115 = vbcast.lane.b32.xlu0 %v1113, 256
    %v1116 = vpop.permute.xlu0 %1115
    %s1118 = sor.u32 256, 8
    %1119 = vbcast.lane.b32.xlu0 %v1113, %s1118
    %v1120 = vpop.permute.xlu0 %1119
    %v1121 = vlaneseq
    %v1122 = vshrl.u32 %v1121, 7
    %v1123 = vsub.s32 2, %v1122
    %v1124 = vrot.slane %v981, %v1123
    %1126 = vbcast.lane.b32.xlu0 %v1124, 256
    %v1127 = vpop.permute.xlu0 %1126
    %s1129 = sor.u32 256, 8
    %1130 = vbcast.lane.b32.xlu0 %v1124, %s1129
    %v1131 = vpop.permute.xlu0 %1130
    %v1132 = vlaneseq
    %v1133 = vshrl.u32 %v1132, 7
    %v1134 = vsub.s32 3, %v1133
    %v1135 = vrot.slane %v981, %v1134
    %1137 = vbcast.lane.b32.xlu0 %v1135, 256
    %v1138 = vpop.permute.xlu0 %1137
    %s1140 = sor.u32 256, 8
    %1141 = vbcast.lane.b32.xlu0 %v1135, %s1140
    %v1142 = vpop.permute.xlu0 %1141
    %v1143 = vlaneseq
    %v1144 = vshrl.u32 %v1143, 7
    %v1145 = vsub.s32 4, %v1144
    %v1146 = vrot.slane %v981, %v1145
    %1148 = vbcast.lane.b32.xlu0 %v1146, 256
    %v1149 = vpop.permute.xlu0 %1148
    %s1151 = sor.u32 256, 8
    %1152 = vbcast.lane.b32.xlu0 %v1146, %s1151
    %v1153 = vpop.permute.xlu0 %1152
    %v1154 = vlaneseq
    %v1155 = vshrl.u32 %v1154, 7
    %v1156 = vsub.s32 5, %v1155
    %v1157 = vrot.slane %v981, %v1156
    %1159 = vbcast.lane.b32.xlu0 %v1157, 256
    %v1160 = vpop.permute.xlu0 %1159
    %s1162 = sor.u32 256, 8
    %1163 = vbcast.lane.b32.xlu0 %v1157, %s1162
    %v1164 = vpop.permute.xlu0 %1163
    %v1165 = vlaneseq
    %v1166 = vshrl.u32 %v1165, 7
    %v1167 = vsub.s32 6, %v1166
    %v1168 = vrot.slane %v981, %v1167
    %1170 = vbcast.lane.b32.xlu0 %v1168, 256
    %v1171 = vpop.permute.xlu0 %1170
    %s1173 = sor.u32 256, 8
    %1174 = vbcast.lane.b32.xlu0 %v1168, %s1173
    %v1175 = vpop.permute.xlu0 %1174
    %v1176 = vlaneseq
    %v1177 = vshrl.u32 %v1176, 7
    %v1178 = vsub.s32 7, %v1177
    %v1179 = vrot.slane %v981, %v1178
    %1181 = vbcast.lane.b32.xlu0 %v1179, 256
    %v1182 = vpop.permute.xlu0 %1181
    %s1184 = sor.u32 256, 8
    %1185 = vbcast.lane.b32.xlu0 %v1179, %s1184
    %v1186 = vpop.permute.xlu0 %1185
    %v1187 = vld [vmem:[#allocation14] sm:$0xf]
    %v1188 = vld [vmem:[#allocation14 + $0x4] sm:$0xf]
    %v1189 = vld [vmem:[#allocation14 + $0x8] sm:$0xf]
    %v1190 = vld [vmem:[#allocation14 + $0xc] sm:$0xf]
    %v1191 = vld [vmem:[#allocation14 + $0x10] sm:$0xf]
    %v1192 = vld [vmem:[#allocation14 + $0x14] sm:$0xf]
    %v1193 = vld [vmem:[#allocation14 + $0x18] sm:$0xf]
    %v1194 = vld [vmem:[#allocation14 + $0x1c] sm:$0xf]
    %v1195 = vld [vmem:[#allocation14 + $0x20] sm:$0xf]
    %v1196 = vld [vmem:[#allocation14 + $0x24] sm:$0xf]
    %v1197 = vld [vmem:[#allocation14 + $0x28] sm:$0xf]
    %v1198 = vld [vmem:[#allocation14 + $0x2c] sm:$0xf]
    %v1199 = vld [vmem:[#allocation14 + $0x30] sm:$0xf]
    %v1200 = vld [vmem:[#allocation14 + $0x34] sm:$0xf]
    %v1201 = vld [vmem:[#allocation14 + $0x38] sm:$0xf]
    %v1202 = vld [vmem:[#allocation14 + $0x3c] sm:$0xf]
    %v1203 = vld [vmem:[#allocation14 + $0x40] sm:$0xf]
    %v1204 = vld [vmem:[#allocation14 + $0x44] sm:$0xf]
    %v1205 = vld [vmem:[#allocation14 + $0x48] sm:$0xf]
    %v1206 = vld [vmem:[#allocation14 + $0x4c] sm:$0xf]
    %v1207 = vld [vmem:[#allocation14 + $0x50] sm:$0xf]
    %v1208 = vld [vmem:[#allocation14 + $0x54] sm:$0xf]
    %v1209 = vld [vmem:[#allocation14 + $0x58] sm:$0xf]
    %v1210 = vld [vmem:[#allocation14 + $0x5c] sm:$0xf]
    %v1211 = vld [vmem:[#allocation14 + $0x60] sm:$0xf]
    %v1212 = vld [vmem:[#allocation14 + $0x64] sm:$0xf]
    %v1213 = vld [vmem:[#allocation14 + $0x68] sm:$0xf]
    %v1214 = vld [vmem:[#allocation14 + $0x6c] sm:$0xf]
    %v1215 = vld [vmem:[#allocation14 + $0x70] sm:$0xf]
    %v1216 = vld [vmem:[#allocation14 + $0x74] sm:$0xf]
    %v1217 = vld [vmem:[#allocation14 + $0x78] sm:$0xf]
    %v1218 = vld [vmem:[#allocation14 + $0x7c] sm:$0xf]
    %v1219 = vunpack.c.l.bf16 %v1187
    %v1220 = vunpack.c.l.bf16 %v1188
    %v1221 = vunpack.c.l.bf16 %v1189
    %v1222 = vunpack.c.l.bf16 %v1190
    %v1223 = vunpack.c.l.bf16 %v1191
    %v1224 = vunpack.c.l.bf16 %v1192
    %v1225 = vunpack.c.l.bf16 %v1193
    %v1226 = vunpack.c.l.bf16 %v1194
    %v1227 = vunpack.c.l.bf16 %v1195
    %v1228 = vunpack.c.l.bf16 %v1196
    %v1229 = vunpack.c.l.bf16 %v1197
    %v1230 = vunpack.c.l.bf16 %v1198
    %v1231 = vunpack.c.l.bf16 %v1199
    %v1232 = vunpack.c.l.bf16 %v1200
    %v1233 = vunpack.c.l.bf16 %v1201
    %v1234 = vunpack.c.l.bf16 %v1202
    %v1235 = vunpack.c.l.bf16 %v1203
    %v1236 = vunpack.c.l.bf16 %v1204
    %v1237 = vunpack.c.l.bf16 %v1205
    %v1238 = vunpack.c.l.bf16 %v1206
    %v1239 = vunpack.c.l.bf16 %v1207
    %v1240 = vunpack.c.l.bf16 %v1208
    %v1241 = vunpack.c.l.bf16 %v1209
    %v1242 = vunpack.c.l.bf16 %v1210
    %v1243 = vunpack.c.l.bf16 %v1211
    %v1244 = vunpack.c.l.bf16 %v1212
    %v1245 = vunpack.c.l.bf16 %v1213
    %v1246 = vunpack.c.l.bf16 %v1214
    %v1247 = vunpack.c.l.bf16 %v1215
    %v1248 = vunpack.c.l.bf16 %v1216
    %v1249 = vunpack.c.l.bf16 %v1217
    %v1250 = vunpack.c.l.bf16 %v1218
    %v1251 = vmul.f32 %v1017, %v1219
    %v1252 = vmul.f32 %v1021, %v1220
    %v1253 = vmul.f32 %v1028, %v1221
    %v1254 = vmul.f32 %v1032, %v1222
    %v1255 = vmul.f32 %v1039, %v1223
    %v1256 = vmul.f32 %v1043, %v1224
    %v1257 = vmul.f32 %v1050, %v1225
    %v1258 = vmul.f32 %v1054, %v1226
    %v1259 = vmul.f32 %v1061, %v1227
    %v1260 = vmul.f32 %v1065, %v1228
    %v1261 = vmul.f32 %v1072, %v1229
    %v1262 = vmul.f32 %v1076, %v1230
    %v1263 = vmul.f32 %v1083, %v1231
    %v1264 = vmul.f32 %v1087, %v1232
    %v1265 = vmul.f32 %v1094, %v1233
    %v1266 = vmul.f32 %v1098, %v1234
    %v1267 = vmul.f32 %v1105, %v1235
    %v1268 = vmul.f32 %v1109, %v1236
    %v1269 = vmul.f32 %v1116, %v1237
    %v1270 = vmul.f32 %v1120, %v1238
    %v1271 = vmul.f32 %v1127, %v1239
    %v1272 = vmul.f32 %v1131, %v1240
    %v1273 = vmul.f32 %v1138, %v1241
    %v1274 = vmul.f32 %v1142, %v1242
    %v1275 = vmul.f32 %v1149, %v1243
    %v1276 = vmul.f32 %v1153, %v1244
    %v1277 = vmul.f32 %v1160, %v1245
    %v1278 = vmul.f32 %v1164, %v1246
    %v1279 = vmul.f32 %v1171, %v1247
    %v1280 = vmul.f32 %v1175, %v1248
    %v1281 = vmul.f32 %v1182, %v1249
    %v1282 = vmul.f32 %v1186, %v1250
    %v1283 = vsel %vm641, %v1251, 0.0
    %v1284 = vsel %vm641, %v1252, 0.0
    %v1285 = vadd.f32 %v1283, %v1284
    %v1286 = vrot.slane %v1285, 4
    %v1287 = vadd.f32 %v1285, %v1286
    %v1288 = vrot.slane %v1287, 2
    %v1289 = vadd.f32 %v1287, %v1288
    %v1290 = vrot.slane %v1289, 1
    %v1291 = vadd.f32 %v1289, %v1290
    %v1292 = vsel %vm641, %v1253, 0.0
    %v1293 = vsel %vm641, %v1254, 0.0
    %v1294 = vadd.f32 %v1292, %v1293
    %v1295 = vrot.slane %v1294, 4
    %v1296 = vadd.f32 %v1294, %v1295
    %v1297 = vrot.slane %v1296, 2
    %v1298 = vadd.f32 %v1296, %v1297
    %v1299 = vrot.slane %v1298, 1
    %v1300 = vadd.f32 %v1298, %v1299
    %v1301 = vsel %vm641, %v1255, 0.0
    %v1302 = vsel %vm641, %v1256, 0.0
    %v1303 = vadd.f32 %v1301, %v1302
    %v1304 = vrot.slane %v1303, 4
    %v1305 = vadd.f32 %v1303, %v1304
    %v1306 = vrot.slane %v1305, 2
    %v1307 = vadd.f32 %v1305, %v1306
    %v1308 = vrot.slane %v1307, 1
    %v1309 = vadd.f32 %v1307, %v1308
    %v1310 = vsel %vm641, %v1257, 0.0
    %v1311 = vsel %vm641, %v1258, 0.0
    %v1312 = vadd.f32 %v1310, %v1311
    %v1313 = vrot.slane %v1312, 4
    %v1314 = vadd.f32 %v1312, %v1313
    %v1315 = vrot.slane %v1314, 2
    %v1316 = vadd.f32 %v1314, %v1315
    %v1317 = vrot.slane %v1316, 1
    %v1318 = vadd.f32 %v1316, %v1317
    %v1319 = vsel %vm641, %v1259, 0.0
    %v1320 = vsel %vm641, %v1260, 0.0
    %v1321 = vadd.f32 %v1319, %v1320
    %v1322 = vrot.slane %v1321, 4
    %v1323 = vadd.f32 %v1321, %v1322
    %v1324 = vrot.slane %v1323, 2
    %v1325 = vadd.f32 %v1323, %v1324
    %v1326 = vrot.slane %v1325, 1
    %v1327 = vadd.f32 %v1325, %v1326
    %v1328 = vsel %vm641, %v1261, 0.0
    %v1329 = vsel %vm641, %v1262, 0.0
    %v1330 = vadd.f32 %v1328, %v1329
    %v1331 = vrot.slane %v1330, 4
    %v1332 = vadd.f32 %v1330, %v1331
    %v1333 = vrot.slane %v1332, 2
    %v1334 = vadd.f32 %v1332, %v1333
    %v1335 = vrot.slane %v1334, 1
    %v1336 = vadd.f32 %v1334, %v1335
    %v1337 = vsel %vm641, %v1263, 0.0
    %v1338 = vsel %vm641, %v1264, 0.0
    %v1339 = vadd.f32 %v1337, %v1338
    %v1340 = vrot.slane %v1339, 4
    %v1341 = vadd.f32 %v1339, %v1340
    %v1342 = vrot.slane %v1341, 2
    %v1343 = vadd.f32 %v1341, %v1342
    %v1344 = vrot.slane %v1343, 1
    %v1345 = vadd.f32 %v1343, %v1344
    %v1346 = vsel %vm641, %v1265, 0.0
    %v1347 = vsel %vm641, %v1266, 0.0
    %v1348 = vadd.f32 %v1346, %v1347
    %v1349 = vrot.slane %v1348, 4
    %v1350 = vadd.f32 %v1348, %v1349
    %v1351 = vrot.slane %v1350, 2
    %v1352 = vadd.f32 %v1350, %v1351
    %v1353 = vrot.slane %v1352, 1
    %v1354 = vadd.f32 %v1352, %v1353
    %v1355 = vsel %vm641, %v1267, 0.0
    %v1356 = vsel %vm641, %v1268, 0.0
    %v1357 = vadd.f32 %v1355, %v1356
    %v1358 = vrot.slane %v1357, 4
    %v1359 = vadd.f32 %v1357, %v1358
    %v1360 = vrot.slane %v1359, 2
    %v1361 = vadd.f32 %v1359, %v1360
    %v1362 = vrot.slane %v1361, 1
    %v1363 = vadd.f32 %v1361, %v1362
    %v1364 = vsel %vm641, %v1269, 0.0
    %v1365 = vsel %vm641, %v1270, 0.0
    %v1366 = vadd.f32 %v1364, %v1365
    %v1367 = vrot.slane %v1366, 4
    %v1368 = vadd.f32 %v1366, %v1367
    %v1369 = vrot.slane %v1368, 2
    %v1370 = vadd.f32 %v1368, %v1369
    %v1371 = vrot.slane %v1370, 1
    %v1372 = vadd.f32 %v1370, %v1371
    %v1373 = vsel %vm641, %v1271, 0.0
    %v1374 = vsel %vm641, %v1272, 0.0
    %v1375 = vadd.f32 %v1373, %v1374
    %v1376 = vrot.slane %v1375, 4
    %v1377 = vadd.f32 %v1375, %v1376
    %v1378 = vrot.slane %v1377, 2
    %v1379 = vadd.f32 %v1377, %v1378
    %v1380 = vrot.slane %v1379, 1
    %v1381 = vadd.f32 %v1379, %v1380
    %v1382 = vsel %vm641, %v1273, 0.0
    %v1383 = vsel %vm641, %v1274, 0.0
    %v1384 = vadd.f32 %v1382, %v1383
    %v1385 = vrot.slane %v1384, 4
    %v1386 = vadd.f32 %v1384, %v1385
    %v1387 = vrot.slane %v1386, 2
    %v1388 = vadd.f32 %v1386, %v1387
    %v1389 = vrot.slane %v1388, 1
    %v1390 = vadd.f32 %v1388, %v1389
    %v1391 = vsel %vm641, %v1275, 0.0
    %v1392 = vsel %vm641, %v1276, 0.0
    %v1393 = vadd.f32 %v1391, %v1392
    %v1394 = vrot.slane %v1393, 4
    %v1395 = vadd.f32 %v1393, %v1394
    %v1396 = vrot.slane %v1395, 2
    %v1397 = vadd.f32 %v1395, %v1396
    %v1398 = vrot.slane %v1397, 1
    %v1399 = vadd.f32 %v1397, %v1398
    %v1400 = vsel %vm641, %v1277, 0.0
    %v1401 = vsel %vm641, %v1278, 0.0
    %v1402 = vadd.f32 %v1400, %v1401
    %v1403 = vrot.slane %v1402, 4
    %v1404 = vadd.f32 %v1402, %v1403
    %v1405 = vrot.slane %v1404, 2
    %v1406 = vadd.f32 %v1404, %v1405
    %v1407 = vrot.slane %v1406, 1
    %v1408 = vadd.f32 %v1406, %v1407
    %v1409 = vsel %vm641, %v1279, 0.0
    %v1410 = vsel %vm641, %v1280, 0.0
    %v1411 = vadd.f32 %v1409, %v1410
    %v1412 = vrot.slane %v1411, 4
    %v1413 = vadd.f32 %v1411, %v1412
    %v1414 = vrot.slane %v1413, 2
    %v1415 = vadd.f32 %v1413, %v1414
    %v1416 = vrot.slane %v1415, 1
    %v1417 = vadd.f32 %v1415, %v1416
    %v1418 = vsel %vm641, %v1281, 0.0
    %v1419 = vsel %vm641, %v1282, 0.0
    %v1420 = vadd.f32 %v1418, %v1419
    %v1421 = vrot.slane %v1420, 4
    %v1422 = vadd.f32 %v1420, %v1421
    %v1423 = vrot.slane %v1422, 2
    %v1424 = vadd.f32 %v1422, %v1423
    %v1425 = vrot.slane %v1424, 1
    %v1426 = vadd.f32 %v1424, %v1425
    %v1443 = vsel %vm922, %v1300, %v1291
    %v1444 = vsel %vm924, %v1309, %v1443
    %v1445 = vsel %vm926, %v1318, %v1444
    %v1446 = vsel %vm928, %v1327, %v1445
    %v1447 = vsel %vm930, %v1336, %v1446
    %v1448 = vsel %vm932, %v1345, %v1447
    %v1449 = vsel %vm934, %v1354, %v1448
    %v1450 = vsel %vm922, %v1372, %v1363
    %v1451 = vsel %vm924, %v1381, %v1450
    %v1452 = vsel %vm926, %v1390, %v1451
    %v1453 = vsel %vm928, %v1399, %v1452
    %v1454 = vsel %vm930, %v1408, %v1453
    %v1455 = vsel %vm932, %v1417, %v1454
    %v1456 = vsel %vm934, %v1426, %v1455
    %v1459 = vadd.f32 %v1009, %v1449
    %v1460 = vadd.f32 %v1010, %v1456
    %1461 = vst.msk [vmem:[#allocation5] sm:$0xff] %vm641, %v1459
    %1462 = vst.msk [vmem:[#allocation5 + $0x8] sm:$0xff] %vm641, %v1460
    %1463 = vst.msk [vmem:[#allocation3] sm:$0xff] %vm994, %v958
    %1464 = vst.msk [vmem:[#allocation3 + $0x8] sm:$0xff] %vm994, %v959
    // Predicated region
    $region106: #{tpu_custom_call.1} parent=1 // pred_check
      %p1465 = pneg %p211
    $region107: #{tpu_custom_call.1} parent=1 // pred_check_branch
      %1467 = sbr.rel (%p1465) target = $region109
    $region108: #{tpu_custom_call.1} parent=1 // pred_region
      %v1468 = vld [vmem:[#allocation4] sm:$0xff]
      %v1469 = vld [vmem:[#allocation4 + $0x8] sm:$0xff]
      %v1470 = vrcp.pop %v1468
      %v1471 = vrcp.pop %v1469
      %v1472 = vld [vmem:[#allocation6] sm:$0xff]
      %v1473 = vld [vmem:[#allocation6 + $0x8] sm:$0xff]
      %v1474 = vld [vmem:[#allocation3] sm:$0xff]
      %v1475 = vld [vmem:[#allocation3 + $0x8] sm:$0xff]
      %1477 = vset.pattern.permute.xlu0 0
      %1478 = vperm.xlu0 %1477, %v1474
      %v1479 = vpop.permute.xlu0 %1478
      %1482 = vset.pattern.permute.xlu0 0
      %1483 = vperm.xlu0 %1482, %v1475
      %v1484 = vpop.permute.xlu0 %1483
      %v1486 = vsub.f32 %v1472, %v1479
      %v1487 = vsub.f32 %v1473, %v1484
      %v1488 = vmul.f32 %v1486, 1.442695
      %v1489 = vpow.pop %v1488
      %v1490 = vmul.f32 %v1487, 1.442695
      %v1491 = vpow.pop %v1490
      %1493 = vset.pattern.permute.xlu0 0
      %1494 = vperm.xlu0 %1493, %v1470
      %v1495 = vpop.permute.xlu0 %1494
      %1498 = vset.pattern.permute.xlu0 0
      %1499 = vperm.xlu0 %1498, %v1471
      %v1500 = vpop.permute.xlu0 %1499
      %v1502 = vmul.f32 %v1489, %v1495
      %v1503 = vmul.f32 %v1491, %v1500
      %1504 = vst.msk [vmem:[#allocation32] sm:$0xff] %vm947, %v1502
      %1505 = vst.msk [vmem:[#allocation32 + $0x8] sm:$0xff] %vm947, %v1503
      %v1506 = vld [vmem:[#allocation5] sm:$0xff]
      %v1507 = vld [vmem:[#allocation5 + $0x8] sm:$0xff]
      %v1508 = vmul.f32 %v1506, %v1495
      %v1509 = vmul.f32 %v1507, %v1500
      %v1510 = vpack.c.bf16 %v1509, %v1508
      %v1511 = vld [vmem:[#allocation22] sm:$0xf]
      %v1512 = vld [vmem:[#allocation22 + $0x4] sm:$0xf]
      %v1513 = vld [vmem:[#allocation22 + $0x8] sm:$0xf]
      %v1514 = vld [vmem:[#allocation22 + $0xc] sm:$0xf]
      %v1515 = vld [vmem:[#allocation11] sm:$0xf]
      %v1516 = vld [vmem:[#allocation11 + $0x4] sm:$0xf]
      %v1517 = vld [vmem:[#allocation23] sm:$0xf]
      %v1518 = vld [vmem:[#allocation23 + $0x4] sm:$0xf]
      %v1519 = vld [vmem:[#allocation23 + $0x8] sm:$0xf]
      %v1520 = vld [vmem:[#allocation23 + $0xc] sm:$0xf]
      %v1523 = vunpack.c.l.b16 %v1515
      %v1524 = vunpack.c.l.b16 %v1516
      %v1525 = vpack.c.b16 %v1524, %v1523
      %v1530 = vunpack.c.l.b16 %v1517
      %v1531 = vunpack.c.l.b16 %v1518
      %v1532 = vunpack.c.l.b16 %v1519
      %v1533 = vunpack.c.l.b16 %v1520
      %v1534 = vpack.c.b16 %v1531, %v1530
      %v1535 = vpack.c.b16 %v1533, %v1532
      %v1539 = vsel %vm641, %v1525, 0
      %1541 = vmatprep.subr.bf16.mxu0 0
      %1542 = vmatpush1.bf16.msra.mxu0 %v1534
      %1543 = vmatprep.subr.bf16.mxu0 0
      %1544 = vmatpush1.bf16.msra.mxu0 %v1535
      %1545 = vmatprep.subr.bf16.mxu0 0
      %1546 = vmatpush1.bf16.msra.mxu0 0
      %1547 = vmatprep.subr.bf16.mxu0 0
      %1548 = vmatpush1.bf16.msra.mxu0 0
      %1549 = vmatprep.subr.bf16.mxu0 0
      %1550 = vmatpush1.bf16.msra.mxu0 0
      %1551 = vmatprep.subr.bf16.mxu0 0
      %1552 = vmatpush1.bf16.msra.mxu0 0
      %1553 = vmatprep.subr.bf16.mxu0 0
      %1554 = vmatpush1.bf16.msra.mxu0 0
      %1555 = vmatprep.subr.bf16.mxu0 0
      %1556 = vmatpush1.bf16.msra.mxu0 0
      %1557 = vmatprep.subr.bf16.mxu0 0
      %1558 = vmatpush1.bf16.msra.mxu0 0
      %1559 = vmatprep.subr.bf16.mxu0 0
      %1560 = vmatpush1.bf16.msra.mxu0 0
      %1561 = vmatprep.subr.bf16.mxu0 0
      %1562 = vmatpush1.bf16.msra.mxu0 0
      %1563 = vmatprep.subr.bf16.mxu0 0
      %1564 = vmatpush1.bf16.msra.mxu0 0
      %1565 = vmatprep.subr.bf16.mxu0 0
      %1566 = vmatpush1.bf16.msra.mxu0 0
      %1567 = vmatprep.subr.bf16.mxu0 0
      %1568 = vmatpush1.bf16.msra.mxu0 0
      %1569 = vmatprep.subr.bf16.mxu0 0
      %1570 = vmatpush1.bf16.msra.mxu0 0
      %1571 = vmatprep.subr.bf16.mxu0 0
      %1572 = vmatpush1.bf16.msra.mxu0 0
      %1573 = vmatprep.mubr.bf16.mxu0 0
      %1574 = vmatmul.mubr.bf16.gmra.mrb[0].mxu0 %v1539
      %v1575 = vpop.f32.mrb[0].mxu0
      %v1576 = vadd.f32 0.0, %v1575
      %v1577 = vpop.f32.mrb[0].mxu0
      %v1578 = vpop.f32.mrb[0].mxu0
      %v1579 = vadd.f32 0.0, %v1578
      %v1580 = vpop.f32.mrb[0].mxu0
      %1581 = vdwg.mxu0
      %v1586 = vunpack.c.l.b16 %v1511
      %v1587 = vunpack.c.l.b16 %v1512
      %v1588 = vunpack.c.l.b16 %v1513
      %v1589 = vunpack.c.l.b16 %v1514
      %v1590 = vpack.c.b16 %v1587, %v1586
      %v1591 = vpack.c.b16 %v1589, %v1588
      %v1595 = vsel %vm641, %v1510, 0
      %1597 = vmatprep.subr.bf16.mxu0 0
      %1598 = vmatpush1.bf16.msra.mxu0 %v1590
      %1599 = vmatprep.subr.bf16.mxu0 0
      %1600 = vmatpush1.bf16.msra.mxu0 %v1591
      %1601 = vmatprep.subr.bf16.mxu0 0
      %1602 = vmatpush1.bf16.msra.mxu0 0
      %1603 = vmatprep.subr.bf16.mxu0 0
      %1604 = vmatpush1.bf16.msra.mxu0 0
      %1605 = vmatprep.subr.bf16.mxu0 0
      %1606 = vmatpush1.bf16.msra.mxu0 0
      %1607 = vmatprep.subr.bf16.mxu0 0
      %1608 = vmatpush1.bf16.msra.mxu0 0
      %1609 = vmatprep.subr.bf16.mxu0 0
      %1610 = vmatpush1.bf16.msra.mxu0 0
      %1611 = vmatprep.subr.bf16.mxu0 0
      %1612 = vmatpush1.bf16.msra.mxu0 0
      %1613 = vmatprep.subr.bf16.mxu0 0
      %1614 = vmatpush1.bf16.msra.mxu0 0
      %1615 = vmatprep.subr.bf16.mxu0 0
      %1616 = vmatpush1.bf16.msra.mxu0 0
      %1617 = vmatprep.subr.bf16.mxu0 0
      %1618 = vmatpush1.bf16.msra.mxu0 0
      %1619 = vmatprep.subr.bf16.mxu0 0
      %1620 = vmatpush1.bf16.msra.mxu0 0
      %1621 = vmatprep.subr.bf16.mxu0 0
      %1622 = vmatpush1.bf16.msra.mxu0 0
      %1623 = vmatprep.subr.bf16.mxu0 0
      %1624 = vmatpush1.bf16.msra.mxu0 0
      %1625 = vmatprep.subr.bf16.mxu0 0
      %1626 = vmatpush1.bf16.msra.mxu0 0
      %1627 = vmatprep.subr.bf16.mxu0 0
      %1628 = vmatpush1.bf16.msra.mxu0 0
      %1629 = vmatprep.mubr.bf16.mxu0 0
      %1630 = vmatmul.mubr.bf16.gmra.mrb[0].mxu0 %v1595
      %v1631 = vpop.f32.mrb[0].mxu0
      %v1632 = vadd.f32 %v1576, %v1631
      %v1633 = vpop.f32.mrb[0].mxu0
      %v1634 = vpop.f32.mrb[0].mxu0
      %v1635 = vadd.f32 %v1579, %v1634
      %v1636 = vpop.f32.mrb[0].mxu0
      %1637 = vdwg.mxu0
      %v1638 = vld [vmem:[#allocation25] sm:$0x1]
      %v1640 = vlaneseq
      %v1641 = vshrl.u32 %v1640, 7
      %v1642 = vsub.s32 0, %v1641
      %v1643 = vrot.slane %v1638, %v1642
      %v1645 = vadd.f32 %v1632, %v1643
      %v1646 = vadd.f32 %v1635, %v1643
      %v1647 = vld [vmem:[#allocation8] sm:$0xff]
      %v1648 = vld [vmem:[#allocation8 + $0x8] sm:$0xff]
      %v1649 = vld [vmem:[#allocation20] sm:$0x1]
      %1651 = vset.pattern.permute.xlu0 0
      %1652 = vperm.xlu0 %1651, %v1647
      %v1653 = vpop.permute.xlu0 %1652
      %1656 = vset.pattern.permute.xlu0 0
      %1657 = vperm.xlu0 %1656, %v1648
      %v1658 = vpop.permute.xlu0 %1657
      %v1661 = vlaneseq
      %v1662 = vshrl.u32 %v1661, 7
      %v1663 = vsub.s32 0, %v1662
      %v1664 = vrot.slane %v1649, %v1663
      %v1666 = vmul.f32 %v1653, %v1664
      %v1667 = vmul.f32 %v1658, %v1664
      %v1668 = vadd.f32 %v1645, %v1666
      %v1669 = vadd.f32 %v1646, %v1667
      %v1670 = vxor.u32 %v1668, 2147483648
      %v1671 = vxor.u32 %v1669, 2147483648
      %v1672 = vmul.f32 %v1670, 1.442695
      %v1673 = vpow.pop %v1672
      %v1674 = vmul.f32 %v1671, 1.442695
      %v1675 = vpow.pop %v1674
      %v1676 = vadd.f32 %v1673, 1.0
      %v1677 = vadd.f32 %v1675, 1.0
      %v1678 = vrcp.pop %v1676
      %v1679 = vmul.f32 1.0, %v1678
      %v1680 = vrcp.pop %v1677
      %v1681 = vmul.f32 1.0, %v1680
      %v1682 = vtanh.pop %v1668
      %v1683 = vtanh.pop %v1669
      %v1684 = vld [vmem:[#allocation13] sm:$0xff]
      %v1685 = vld [vmem:[#allocation13 + $0x8] sm:$0xff]
      %1688 = vrot.lane.b32.xlu0 %v1684, 32
      %v1689 = vpop.permute.xlu0 %1688
      %1690 = vrot.lane.b32.xlu0 %v1685, 32
      %v1691 = vpop.permute.xlu0 %1690
      %v1694 = vmul.f32 %v1679, %v1689
      %v1695 = vmul.f32 %v1681, %v1691
      %1698 = vrot.lane.b32.xlu0 %v1682, 64
      %v1699 = vpop.permute.xlu0 %1698
      %1700 = vrot.lane.b32.xlu0 %v1683, 64
      %v1701 = vpop.permute.xlu0 %1700
      %v1704 = vmul.f32 %v1679, %v1699
      %v1705 = vmul.f32 %v1681, %v1701
      %1708 = vrot.lane.b32.xlu0 %v1704, 32
      %v1709 = vpop.permute.xlu0 %1708
      %1710 = vrot.lane.b32.xlu0 %v1705, 32
      %v1711 = vpop.permute.xlu0 %1710
      %v1714 = vadd.f32 %v1694, %v1709
      %v1715 = vadd.f32 %v1695, %v1711
      %v1716 = vtanh.pop %v1714
      %v1717 = vtanh.pop %v1715
      %1720 = vrot.lane.b32.xlu0 %v1716, 64
      %v1721 = vpop.permute.xlu0 %1720
      %1722 = vrot.lane.b32.xlu0 %v1717, 64
      %v1723 = vpop.permute.xlu0 %1722
      %v1726 = vmul.f32 %v1679, %v1721
      %v1727 = vmul.f32 %v1681, %v1723
      %v1728 = vpack.c.bf16 %v1727, %v1726
      %v1729 = vld [vmem:[#allocation26] sm:$0xf]
      %v1730 = vld [vmem:[#allocation26 + $0x4] sm:$0xf]
      %v1731 = vld [vmem:[#allocation26 + $0x8] sm:$0xf]
      %v1732 = vld [vmem:[#allocation26 + $0xc] sm:$0xf]
      %v1733 = vld [vmem:[#allocation7] sm:$0x1]
      %v1735 = vlaneseq
      %v1736 = vshrl.u32 %v1735, 7
      %v1737 = vsub.s32 0, %v1736
      %v1738 = vrot.slane %v1733, %v1737
      %1741 = vrot.lane.b32.xlu0 %v1728, 32
      %v1742 = vpop.permute.xlu0 %1741
      %v1747 = vunpack.c.l.b16 %v1729
      %v1748 = vunpack.c.l.b16 %v1730
      %v1749 = vunpack.c.l.b16 %v1731
      %v1750 = vunpack.c.l.b16 %v1732
      %v1751 = vpack.c.b16 %v1748, %v1747
      %v1752 = vpack.c.b16 %v1750, %v1749
      %v1756 = vsel %vm641, %v1742, 0
      %1758 = vmatprep.subr.bf16.mxu0 0
      %1759 = vmatpush1.bf16.msra.mxu0 %v1751
      %1760 = vmatprep.subr.bf16.mxu0 0
      %1761 = vmatpush1.bf16.msra.mxu0 %v1752
      %1762 = vmatprep.subr.bf16.mxu0 0
      %1763 = vmatpush1.bf16.msra.mxu0 0
      %1764 = vmatprep.subr.bf16.mxu0 0
      %1765 = vmatpush1.bf16.msra.mxu0 0
      %1766 = vmatprep.subr.bf16.mxu0 0
      %1767 = vmatpush1.bf16.msra.mxu0 0
      %1768 = vmatprep.subr.bf16.mxu0 0
      %1769 = vmatpush1.bf16.msra.mxu0 0
      %1770 = vmatprep.subr.bf16.mxu0 0
      %1771 = vmatpush1.bf16.msra.mxu0 0
      %1772 = vmatprep.subr.bf16.mxu0 0
      %1773 = vmatpush1.bf16.msra.mxu0 0
      %1774 = vmatprep.subr.bf16.mxu0 0
      %1775 = vmatpush1.bf16.msra.mxu0 0
      %1776 = vmatprep.subr.bf16.mxu0 0
      %1777 = vmatpush1.bf16.msra.mxu0 0
      %1778 = vmatprep.subr.bf16.mxu0 0
      %1779 = vmatpush1.bf16.msra.mxu0 0
      %1780 = vmatprep.subr.bf16.mxu0 0
      %1781 = vmatpush1.bf16.msra.mxu0 0
      %1782 = vmatprep.subr.bf16.mxu0 0
      %1783 = vmatpush1.bf16.msra.mxu0 0
      %1784 = vmatprep.subr.bf16.mxu0 0
      %1785 = vmatpush1.bf16.msra.mxu0 0
      %1786 = vmatprep.subr.bf16.mxu0 0
      %1787 = vmatpush1.bf16.msra.mxu0 0
      %1788 = vmatprep.subr.bf16.mxu0 0
      %1789 = vmatpush1.bf16.msra.mxu0 0
      %1790 = vmatprep.mubr.bf16.mxu0 0
      %1791 = vmatmul.mubr.bf16.gmra.mrb[0].mxu0 %v1756
      %v1792 = vpop.f32.mrb[0].mxu0
      %v1793 = vadd.f32 %v1738, %v1792
      %v1794 = vpop.f32.mrb[0].mxu0
      %v1795 = vpop.f32.mrb[0].mxu0
      %v1796 = vadd.f32 %v1738, %v1795
      %v1797 = vpop.f32.mrb[0].mxu0
      %1798 = vdwg.mxu0
      %1799 = vst.msk [vmem:[#allocation28] sm:$0xff] %vm994, %v1793
      %1800 = vst.msk [vmem:[#allocation28 + $0x8] sm:$0xff] %vm994, %v1796
      %1803 = vrot.lane.b32.xlu0 %v1726, 32
      %v1804 = vpop.permute.xlu0 %1803
      %1805 = vrot.lane.b32.xlu0 %v1727, 32
      %v1806 = vpop.permute.xlu0 %1805
      %1809 = vst.msk [vmem:[#allocation29] sm:$0xff] %vm641, %v1804
      %1810 = vst.msk [vmem:[#allocation29 + $0x8] sm:$0xff] %vm641, %v1806
      %1813 = vrot.lane.b32.xlu0 %v1714, 96
      %v1814 = vpop.permute.xlu0 %1813
      %1815 = vrot.lane.b32.xlu0 %v1715, 96
      %v1816 = vpop.permute.xlu0 %1815
      %1819 = vst.msk [vmem:[#allocation31] sm:$0xff] %vm641, %v1814
      %1820 = vst.msk [vmem:[#allocation31 + $0x8] sm:$0xff] %vm641, %v1816
    $region109: #{tpu_custom_call.1} parent=1 // pred_fallthru
      _
    // Predicated region
    $region110: #{tpu_custom_call.1} parent=1 // pred_check
      _
    $region111: #{tpu_custom_call.1} parent=1 // pred_check_branch
      %1822 = sbr.rel (0) target = $region113
    $region112: #{tpu_custom_call.1} parent=1 // pred_region
      %s1824 = ssub.s32 256, 256
      %1825 = vsyncadd [#allocation10], %s1824
      %s1826 = sshll.u32 [#allocation28], 4
      %s1827 = int_to_ptr.vmem [resolvable:$true] %s1826
      %1832 = dma.vmem_to_hbm [thread:$0]  %s1827, 256, %s13, [#allocation10], 128, 128, 8
    $region113: #{tpu_custom_call.1} parent=1 // pred_fallthru
      _
    // Predicated region
    $region114: #{tpu_custom_call.1} parent=1 // pred_check
      _
    $region115: #{tpu_custom_call.1} parent=1 // pred_check_branch
      %1834 = sbr.rel (0) target = $region117
    $region116: #{tpu_custom_call.1} parent=1 // pred_region
      %s1836 = ssub.s32 256, 256
      %1837 = vsyncadd [#allocation30], %s1836
      %s1838 = sshll.u32 [#allocation29], 4
      %s1839 = int_to_ptr.vmem [resolvable:$true] %s1838
      %1844 = dma.vmem_to_hbm [thread:$0]  %s1839, 256, %s14, [#allocation30], 128, 128, 8
    $region117: #{tpu_custom_call.1} parent=1 // pred_fallthru
      _
    // Predicated region
    $region118: #{tpu_custom_call.1} parent=1 // pred_check
      _
    $region119: #{tpu_custom_call.1} parent=1 // pred_check_branch
      %1846 = sbr.rel (0) target = $region121
    $region120: #{tpu_custom_call.1} parent=1 // pred_region
      %s1848 = ssub.s32 256, 256
      %1849 = vsyncadd [#allocation30], %s1848
      %s1850 = sshll.u32 [#allocation31], 4
      %s1851 = int_to_ptr.vmem [resolvable:$true] %s1850
      %1856 = dma.vmem_to_hbm [thread:$0]  %s1851, 256, %s15, [#allocation30], 128, 128, 8
    $region121: #{tpu_custom_call.1} parent=1 // pred_fallthru
      _
    // Predicated region
    $region122: #{tpu_custom_call.1} parent=1 // pred_check
      _
    $region123: #{tpu_custom_call.1} parent=1 // pred_check_branch
      %1858 = sbr.rel (0) target = $region125
    $region124: #{tpu_custom_call.1} parent=1 // pred_region
      %s1860 = ssub.s32 256, 256
      %1861 = vsyncadd [#allocation33], %s1860
      %s1862 = sshll.u32 [#allocation32], 4
      %s1863 = int_to_ptr.vmem [resolvable:$true] %s1862
      %1868 = dma.vmem_to_hbm [thread:$0]  %s1863, 256, %s16, [#allocation33], 128, 128, 8
    $region125: #{tpu_custom_call.1} parent=1 // pred_fallthru
      _
    // Predicated region
    $region126: #{tpu_custom_call.1} parent=1 // pred_check
      _
    $region127: #{tpu_custom_call.1} parent=1 // pred_check_branch
      %1870 = sbr.rel (0) target = $region129
    $region128: #{tpu_custom_call.1} parent=1 // pred_region
      %1871 = dma.done [#allocation10], 256
    $region129: #{tpu_custom_call.1} parent=1 // pred_fallthru
      _
    // Predicated region
    $region130: #{tpu_custom_call.1} parent=1 // pred_check
      _
    $region131: #{tpu_custom_call.1} parent=1 // pred_check_branch
      %1873 = sbr.rel (0) target = $region133
    $region132: #{tpu_custom_call.1} parent=1 // pred_region
      %1874 = dma.done [#allocation30], 256
    $region133: #{tpu_custom_call.1} parent=1 // pred_fallthru
      _
    // Predicated region
    $region134: #{tpu_custom_call.1} parent=1 // pred_check
      _
    $region135: #{tpu_custom_call.1} parent=1 // pred_check_branch
      %1876 = sbr.rel (0) target = $region137
    $region136: #{tpu_custom_call.1} parent=1 // pred_region
      %1877 = dma.done [#allocation30], 256
    $region137: #{tpu_custom_call.1} parent=1 // pred_fallthru
      _
    // Predicated region
    $region138: #{tpu_custom_call.1} parent=1 // pred_check
      _
    $region139: #{tpu_custom_call.1} parent=1 // pred_check_branch
      %1879 = sbr.rel (0) target = $region141
    $region140: #{tpu_custom_call.1} parent=1 // pred_region
      %1880 = dma.done [#allocation33], 256
    $region141: #{tpu_custom_call.1} parent=1 // pred_fallthru
      _
    %1881 = vsyncpa [#allocation9], 1
    %1882 = vsyncpa [#allocation12], 1
    %1883 = vsyncpa [#allocation15], 1
    %1884 = vsyncpa [#allocation18], 1
    %1885 = vsyncpa [#allocation21], 1
    %1886 = vsyncpa [#allocation24], 1
    %1887 = vsyncpa [#allocation27], 1
    %1888 = vsyncpa [#allocation10], 1
    %1889 = vsyncpa [#allocation30], 1
    %1890 = vsyncpa [#allocation33], 1

</llo_original>
